<compile_context>
chip_gen: v6e
topology: v6e:2x2x1
jax: 0.10.0
libtpu: 0.0.40
codegen_flags: <defaults>
</compile_context>

<pallas_src>
import functools

import jax
import jax.numpy as jnp
from jax import lax
from jax.experimental import pallas as pl
from jax.experimental.pallas import tpu as pltpu


def _round_up(x, m):
    return (x + m - 1) // m * m


def _tap_order():
    """Global 5x5 tap ordering: [center, inner-3x3 ring (8), outer ring (16)].

    With this ordering the 1x1 route uses patch rows [0:Cin_p), the 3x3 route rows
    [0:9*Cin_p) and the 5x5 route all 25*Cin_p rows, so no route multiplies zeros.
    """
    center = [(2, 2)]
    inner = [(gy, gx) for gy in (1, 2, 3) for gx in (1, 2, 3) if (gy, gx) != (2, 2)]
    outer = [(gy, gx) for gy in range(5) for gx in range(5)
             if not (1 <= gy <= 3 and 1 <= gx <= 3)]
    return center + inner + outer


def _inception_kernel(x_ref, h_ref, w1_ref, w3_ref, w5_ref, b_ref, o_ref,
                      slab_ref, patch_ref, *, shifts, cin_p, c1, c3):
    """One (batch, spatial-tile) grid step.

    x_ref  : (1, Cin_p, TILE)      bf16  main slab of the flattened padded plane
    h_ref  : (1, Cin_p, HALO_PAD)  bf16  halo slab (first lanes of the next tile)
    w1/3/5 : (C1, Cin_p) / (C3, 9*Cin_p) / (C5, 25*Cin_p)  bf16 K-packed weights
    b_ref  : (Ct, 1)  f32  concatenated biases [b1; b3; b5]
    o_ref  : (1, Ct, TILE)  f32  fused-concat output, spatial on the lane axis
    slab_ref  : (Cin_p, TILE+HALO_PAD)  bf16 scratch  contiguous halo'd slab
    patch_ref : (25*Cin_p, TILE)        bf16 scratch  K-packed conv patches
    """
    tile = o_ref.shape[2]

    # Stitch the contiguous halo'd slab (two aligned, lane-dense stores).
    slab_ref[:, :tile] = x_ref[0]
    slab_ref[:, tile:] = h_ref[0]

    # Build the K-packed patch: row block j holds the slab shifted by shifts[j]
    # (static lane shifts; each write is a full (Cin_p, TILE) aligned store).
    for j, s in enumerate(shifts):
        r = j * cin_p
        patch_ref[r:r + cin_p, :] = slab_ref[:, s:s + tile]

    # One MXU dot per route, taps on the contraction axis; bias add in f32 (VPU);
    # channel concat = three disjoint sublane-aligned row-band stores.
    y1 = jnp.dot(w1_ref[...], patch_ref[:cin_p, :],
                 preferred_element_type=jnp.float32)
    o_ref[0, :c1, :] = (y1 + b_ref[:c1]).astype(o_ref.dtype)

    y3 = jnp.dot(w3_ref[...], patch_ref[:9 * cin_p, :],
                 preferred_element_type=jnp.float32)
    o_ref[0, c1:c1 + c3, :] = (y3 + b_ref[c1:c1 + c3]).astype(o_ref.dtype)

    y5 = jnp.dot(w5_ref[...], patch_ref[...],
                 preferred_element_type=jnp.float32)
    o_ref[0, c1 + c3:, :] = (y5 + b_ref[c1 + c3:]).astype(o_ref.dtype)


def pack_inception_params(params, cin, *, compute_dtype=jnp.bfloat16):
    """Pre-pack route weights/biases into K-packed MXU matrices.

    Hoisted out of the forward path (params are static); call once and reuse.
    """
    (w1, b1), (w3, b3), (w5, b5) = params
    cin_p = _round_up(max(cin, 1), 8)
    tap_idx = {t: i for i, t in enumerate(_tap_order())}

    def pack(w, n_taps):
        cout, cin_w, k, _ = w.shape
        off = 2 - k // 2                       # center the kxk kernel in the 5x5 window
        wm = jnp.zeros((cout, n_taps, cin_p), jnp.float32)
        for ky in range(k):
            for kx in range(k):
                j = tap_idx[(ky + off, kx + off)]
                wm = wm.at[:, j, :cin_w].set(w[:, :, ky, kx])
        return wm.reshape(cout, n_taps * cin_p).astype(compute_dtype)

    bias = jnp.concatenate([b1, b3, b5]).reshape(-1, 1).astype(jnp.float32)
    return dict(W1=pack(w1, 1), W3=pack(w3, 9), W5=pack(w5, 25), bias=bias,
                cin_p=cin_p, c1=w1.shape[0], c3=w3.shape[0], c5=w5.shape[0])


def inception_forward(x_nchw, packed, *, tile_hw=1024, compute_dtype=jnp.bfloat16):
    """Fused Inception forward (1x1 + 3x3 + 5x5 'same' convs, channel concat).

    x_nchw : (N, Cin, H, W) float32.  Returns (N, C1+C3+C5, H, W) float32.
    tile_hw: lane-tile target; 2048-4096 recommended on v5e/v6e, 512-1024 on v7x.
    """
    N, Cin, H, W = x_nchw.shape
    cin_p = packed["cin_p"]
    c1, c3, c5 = packed["c1"], packed["c3"], packed["c5"]
    Ct = c1 + c3 + c5

    PAD = 2                                    # radius of the largest (5x5) kernel
    Hp, Wp = H + 2 * PAD, W + 2 * PAD
    HWp = H * Wp                               # output plane kept at padded width
    HALO = 4 * Wp + 4                          # largest tap shift (gy=4, gx=4)
    HALO_PAD = _round_up(HALO, 128)

    # Spatial tile (multiple of 128, > HALO so a shifted window spans at most the
    # current tile plus the small halo slab); then shrink to minimise tail waste.
    TILE = min(_round_up(tile_hw, 128), _round_up(HWp, 128))
    TILE = max(TILE, _round_up(HALO + 1, 128))
    T = -(-HWp // TILE)
    TILE = max(_round_up(-(-HWp // T), 128), _round_up(HALO + 1, 128))

    # ---- pad + flatten the activation ONCE (no per-tile stack / no im2col) --------
    Lpad = (T + 1) * TILE                      # room for the last tile's halo
    xpad = jnp.pad(x_nchw, ((0, 0), (0, cin_p - Cin), (PAD, PAD), (PAD, PAD)))
    F = xpad.reshape(N, cin_p, Hp * Wp)
    F = jnp.pad(F, ((0, 0), (0, 0), (0, Lpad - Hp * Wp))).astype(compute_dtype)
    # Small halo slabs: first HALO_PAD lanes of each *next* tile (~HALO/TILE of F).
    h_halo = jnp.concatenate(
        [F[:, :, (t + 1) * TILE:(t + 1) * TILE + HALO_PAD] for t in range(T)], axis=2)

    shifts = tuple(gy * Wp + gx for gy, gx in _tap_order())
    kernel = functools.partial(_inception_kernel, shifts=shifts,
                               cin_p=cin_p, c1=c1, c3=c3)

    flops = 2 * N * T * TILE * cin_p * (c1 + 9 * c3 + 25 * c5)
    bytes_accessed = (F.size * 2 + h_halo.size * 2 + N * Ct * T * TILE * 4
                      + (packed["W1"].size + packed["W3"].size + packed["W5"].size) * 2)

    out = pl.pallas_call(
        kernel,
        out_shape=jax.ShapeDtypeStruct((N, Ct, T * TILE), jnp.float32),
        grid_spec=pltpu.PrefetchScalarGridSpec(
            num_scalar_prefetch=0,
            grid=(N, T),
            in_specs=[
                pl.BlockSpec((1, cin_p, TILE), lambda n, t: (n, 0, t)),
                pl.BlockSpec((1, cin_p, HALO_PAD), lambda n, t: (n, 0, t)),
                pl.BlockSpec((c1, cin_p), lambda n, t: (0, 0)),
                pl.BlockSpec((c3, 9 * cin_p), lambda n, t: (0, 0)),
                pl.BlockSpec((c5, 25 * cin_p), lambda n, t: (0, 0)),
                pl.BlockSpec((Ct, 1), lambda n, t: (0, 0)),
            ],
            out_specs=pl.BlockSpec((1, Ct, TILE), lambda n, t: (n, 0, t)),
            scratch_shapes=[
                pltpu.VMEM((cin_p, TILE + HALO_PAD), compute_dtype),   # halo'd slab
                pltpu.VMEM((25 * cin_p, TILE), compute_dtype),         # K-packed patch
            ]),
        compiler_params=pltpu.CompilerParams(
            dimension_semantics=("parallel", "parallel"),
            vmem_limit_bytes=int(48 * 1024 * 1024)),
        cost_estimate=pl.CostEstimate(flops=flops, transcendentals=0,
                                      bytes_accessed=bytes_accessed),
    )(F, h_halo, packed["W1"], packed["W3"], packed["W5"], packed["bias"])

    # Output is already channel-major NC-flat: drop padded-width columns only.
    y = out[:, :, :HWp].reshape(N, Ct, H, Wp)[:, :, :, :W]
    return y


def ref_forward(x_nchw, params):
    """Pure-JAX reference matching PyTorch Conv2d + torch.cat(dim=1)."""
    outs = []
    for w, b in params:
        p = w.shape[-1] // 2
        y = lax.conv_general_dilated(
            x_nchw, w, window_strides=(1, 1), padding=[(p, p), (p, p)],
            dimension_numbers=('NCHW', 'OIHW', 'NCHW'),
            precision=lax.Precision.HIGHEST)
        outs.append(y + b[None, :, None, None])
    return jnp.concatenate(outs, axis=1)


if __name__ == "__main__":
    key = jax.random.PRNGKey(0)
    ks = jax.random.split(key, 7)

    N, Cin, H, W = 2, 4, 16, 16
    C1, C3, C5 = 8, 8, 8  # per-route output channels (chanelArr analogue)

    x = jax.random.normal(ks[0], (N, Cin, H, W), jnp.float32)
    w1 = jax.random.normal(ks[1], (C1, Cin, 1, 1), jnp.float32) * 0.1
    b1 = jax.random.normal(ks[2], (C1,), jnp.float32) * 0.1
    w3 = jax.random.normal(ks[3], (C3, Cin, 3, 3), jnp.float32) * 0.1
    b3 = jax.random.normal(ks[4], (C3,), jnp.float32) * 0.1
    w5 = jax.random.normal(ks[5], (C5, Cin, 5, 5), jnp.float32) * 0.1
    b5 = jax.random.normal(ks[6], (C5,), jnp.float32) * 0.1
    params = [(w1, b1), (w3, b3), (w5, b5)]

    packed = pack_inception_params(params, Cin)        # hoisted weight prep (once)
    y = inception_forward(x, packed)
    jax.block_until_ready(y)
    assert y.shape == (N, C1 + C3 + C5, H, W), y.shape

    # Apples-to-apples check: f32 reference conv on the same bf16-rounded inputs.
    rd = lambda a: a.astype(jnp.bfloat16).astype(jnp.float32)
    params_rd = [(rd(w), b) for (w, b) in params]
    y_ref_rd = ref_forward(rd(x), params_rd)
    assert jnp.allclose(y, y_ref_rd, atol=2e-3, rtol=2e-3), \
        float(jnp.max(jnp.abs(y - y_ref_rd)))

    # Loose sanity check vs. the exact f32 reference (bf16 input rounding only).
    y_ref = ref_forward(x, params)
    assert jnp.allclose(y, y_ref, atol=1e-1, rtol=1e-1), \
        float(jnp.max(jnp.abs(y - y_ref)))

    print("KERNEL_OK")
</pallas_src>

<mosaic_0001>
module attributes {stable_mosaic.version = 11 : i64} {
  func.func @_inception_kernel(%arg0: i32, %arg1: i32, %arg2: memref<1x8x384xbf16, #tpu.memory_space<vmem>>, %arg3: memref<1x8x128xbf16, #tpu.memory_space<vmem>>, %arg4: memref<8x8xbf16, #tpu.memory_space<vmem>>, %arg5: memref<8x72xbf16, #tpu.memory_space<vmem>>, %arg6: memref<8x200xbf16, #tpu.memory_space<vmem>>, %arg7: memref<24x1xf32, #tpu.memory_space<vmem>>, %arg8: memref<1x24x384xf32, #tpu.memory_space<vmem>>, %arg9: memref<8x512xbf16, #tpu.memory_space<vmem>>, %arg10: memref<200x384xbf16, #tpu.memory_space<vmem>>) attributes {dimension_semantics = [#tpu.dimension_semantics<parallel>, #tpu.dimension_semantics<parallel>], iteration_bounds = array<i64: 2, 1>, scalar_prefetch = 0 : i64, scratch_operands = 2 : i64, tpu.core_type = #tpu.core_type<tc>, window_params = [{transform_indices = @transform_0, window_bounds = array<i64: 1, 8, 384>}, {transform_indices = @transform_1, window_bounds = array<i64: 1, 8, 128>}, {pipeline_mode = #tpu.pipeline_mode<synchronous>, transform_indices = @transform_2, window_bounds = array<i64: 8, 8>}, {pipeline_mode = #tpu.pipeline_mode<synchronous>, transform_indices = @transform_3, window_bounds = array<i64: 8, 72>}, {pipeline_mode = #tpu.pipeline_mode<synchronous>, transform_indices = @transform_4, window_bounds = array<i64: 8, 200>}, {pipeline_mode = #tpu.pipeline_mode<synchronous>, transform_indices = @transform_5, window_bounds = array<i64: 24, 1>}, {transform_indices = @transform_6, window_bounds = array<i64: 1, 24, 384>}]} {
    %c0 = arith.constant 0 : index
    %c0_0 = arith.constant 0 : index
    %c0_1 = arith.constant 0 : index
    %0 = vector.load %arg2[%c0, %c0_0, %c0_1] : memref<1x8x384xbf16, #tpu.memory_space<vmem>>, vector<1x8x384xbf16>
    %1 = vector.shape_cast %0 : vector<1x8x384xbf16> to vector<8x384xbf16>
    %c0_2 = arith.constant 0 : index
    %c0_3 = arith.constant 0 : index
    %2 = vector.load %arg9[%c0_2, %c0_3] : memref<8x512xbf16, #tpu.memory_space<vmem>>, vector<8x384xbf16>
    tpu.vector_store %arg9[%c0_2, %c0_3], %1 {strides = array<i32>} : memref<8x512xbf16, #tpu.memory_space<vmem>>, vector<8x384xbf16>,
    %c0_4 = arith.constant 0 : index
    %c0_5 = arith.constant 0 : index
    %c0_6 = arith.constant 0 : index
    %3 = vector.load %arg3[%c0_4, %c0_5, %c0_6] : memref<1x8x128xbf16, #tpu.memory_space<vmem>>, vector<1x8x128xbf16>
    %4 = vector.shape_cast %3 : vector<1x8x128xbf16> to vector<8x128xbf16>
    %c0_7 = arith.constant 0 : index
    %c384 = arith.constant 384 : index
    %5 = vector.load %arg9[%c0_7, %c384] : memref<8x512xbf16, #tpu.memory_space<vmem>>, vector<8x128xbf16>
    tpu.vector_store %arg9[%c0_7, %c384], %4 {strides = array<i32>} : memref<8x512xbf16, #tpu.memory_space<vmem>>, vector<8x128xbf16>,
    %c0_8 = arith.constant 0 : index
    %c42 = arith.constant 42 : index
    %6 = vector.load %arg9[%c0_8, %c42] : memref<8x512xbf16, #tpu.memory_space<vmem>>, vector<8x384xbf16>
    %c0_9 = arith.constant 0 : index
    %c0_10 = arith.constant 0 : index
    %7 = vector.load %arg10[%c0_9, %c0_10] : memref<200x384xbf16, #tpu.memory_space<vmem>>, vector<8x384xbf16>
    tpu.vector_store %arg10[%c0_9, %c0_10], %6 {strides = array<i32>} : memref<200x384xbf16, #tpu.memory_space<vmem>>, vector<8x384xbf16>,
    %c0_11 = arith.constant 0 : index
    %c21 = arith.constant 21 : index
    %8 = vector.load %arg9[%c0_11, %c21] : memref<8x512xbf16, #tpu.memory_space<vmem>>, vector<8x384xbf16>
    %c8 = arith.constant 8 : index
    %c0_12 = arith.constant 0 : index
    %9 = vector.load %arg10[%c8, %c0_12] : memref<200x384xbf16, #tpu.memory_space<vmem>>, vector<8x384xbf16>
    tpu.vector_store %arg10[%c8, %c0_12], %8 {strides = array<i32>} : memref<200x384xbf16, #tpu.memory_space<vmem>>, vector<8x384xbf16>,
    %c0_13 = arith.constant 0 : index
    %c22 = arith.constant 22 : index
    %10 = vector.load %arg9[%c0_13, %c22] : memref<8x512xbf16, #tpu.memory_space<vmem>>, vector<8x384xbf16>
    %c16 = arith.constant 16 : index
    %c0_14 = arith.constant 0 : index
    %11 = vector.load %arg10[%c16, %c0_14] : memref<200x384xbf16, #tpu.memory_space<vmem>>, vector<8x384xbf16>
    tpu.vector_store %arg10[%c16, %c0_14], %10 {strides = array<i32>} : memref<200x384xbf16, #tpu.memory_space<vmem>>, vector<8x384xbf16>,
    %c0_15 = arith.constant 0 : index
    %c23 = arith.constant 23 : index
    %12 = vector.load %arg9[%c0_15, %c23] : memref<8x512xbf16, #tpu.memory_space<vmem>>, vector<8x384xbf16>
    %c24 = arith.constant 24 : index
    %c0_16 = arith.constant 0 : index
    %13 = vector.load %arg10[%c24, %c0_16] : memref<200x384xbf16, #tpu.memory_space<vmem>>, vector<8x384xbf16>
    tpu.vector_store %arg10[%c24, %c0_16], %12 {strides = array<i32>} : memref<200x384xbf16, #tpu.memory_space<vmem>>, vector<8x384xbf16>,
    %c0_17 = arith.constant 0 : index
    %c41 = arith.constant 41 : index
    %14 = vector.load %arg9[%c0_17, %c41] : memref<8x512xbf16, #tpu.memory_space<vmem>>, vector<8x384xbf16>
    %c32 = arith.constant 32 : index
    %c0_18 = arith.constant 0 : index
    %15 = vector.load %arg10[%c32, %c0_18] : memref<200x384xbf16, #tpu.memory_space<vmem>>, vector<8x384xbf16>
    tpu.vector_store %arg10[%c32, %c0_18], %14 {strides = array<i32>} : memref<200x384xbf16, #tpu.memory_space<vmem>>, vector<8x384xbf16>,
    %c0_19 = arith.constant 0 : index
    %c43 = arith.constant 43 : index
    %16 = vector.load %arg9[%c0_19, %c43] : memref<8x512xbf16, #tpu.memory_space<vmem>>, vector<8x384xbf16>
    %c40 = arith.constant 40 : index
    %c0_20 = arith.constant 0 : index
    %17 = vector.load %arg10[%c40, %c0_20] : memref<200x384xbf16, #tpu.memory_space<vmem>>, vector<8x384xbf16>
    tpu.vector_store %arg10[%c40, %c0_20], %16 {strides = array<i32>} : memref<200x384xbf16, #tpu.memory_space<vmem>>, vector<8x384xbf16>,
    %c0_21 = arith.constant 0 : index
    %c61 = arith.constant 61 : index
    %18 = vector.load %arg9[%c0_21, %c61] : memref<8x512xbf16, #tpu.memory_space<vmem>>, vector<8x384xbf16>
    %c48 = arith.constant 48 : index
    %c0_22 = arith.constant 0 : index
    %19 = vector.load %arg10[%c48, %c0_22] : memref<200x384xbf16, #tpu.memory_space<vmem>>, vector<8x384xbf16>
    tpu.vector_store %arg10[%c48, %c0_22], %18 {strides = array<i32>} : memref<200x384xbf16, #tpu.memory_space<vmem>>, vector<8x384xbf16>,
    %c0_23 = arith.constant 0 : index
    %c62 = arith.constant 62 : index
    %20 = vector.load %arg9[%c0_23, %c62] : memref<8x512xbf16, #tpu.memory_space<vmem>>, vector<8x384xbf16>
    %c56 = arith.constant 56 : index
    %c0_24 = arith.constant 0 : index
    %21 = vector.load %arg10[%c56, %c0_24] : memref<200x384xbf16, #tpu.memory_space<vmem>>, vector<8x384xbf16>
    tpu.vector_store %arg10[%c56, %c0_24], %20 {strides = array<i32>} : memref<200x384xbf16, #tpu.memory_space<vmem>>, vector<8x384xbf16>,
    %c0_25 = arith.constant 0 : index
    %c63 = arith.constant 63 : index
    %22 = vector.load %arg9[%c0_25, %c63] : memref<8x512xbf16, #tpu.memory_space<vmem>>, vector<8x384xbf16>
    %c64 = arith.constant 64 : index
    %c0_26 = arith.constant 0 : index
    %23 = vector.load %arg10[%c64, %c0_26] : memref<200x384xbf16, #tpu.memory_space<vmem>>, vector<8x384xbf16>
    tpu.vector_store %arg10[%c64, %c0_26], %22 {strides = array<i32>} : memref<200x384xbf16, #tpu.memory_space<vmem>>, vector<8x384xbf16>,
    %c0_27 = arith.constant 0 : index
    %c0_28 = arith.constant 0 : index
    %24 = vector.load %arg9[%c0_27, %c0_28] : memref<8x512xbf16, #tpu.memory_space<vmem>>, vector<8x384xbf16>
    %c72 = arith.constant 72 : index
    %c0_29 = arith.constant 0 : index
    %25 = vector.load %arg10[%c72, %c0_29] : memref<200x384xbf16, #tpu.memory_space<vmem>>, vector<8x384xbf16>
    tpu.vector_store %arg10[%c72, %c0_29], %24 {strides = array<i32>} : memref<200x384xbf16, #tpu.memory_space<vmem>>, vector<8x384xbf16>,
    %c0_30 = arith.constant 0 : index
    %c1 = arith.constant 1 : index
    %26 = vector.load %arg9[%c0_30, %c1] : memref<8x512xbf16, #tpu.memory_space<vmem>>, vector<8x384xbf16>
    %c80 = arith.constant 80 : index
    %c0_31 = arith.constant 0 : index
    %27 = vector.load %arg10[%c80, %c0_31] : memref<200x384xbf16, #tpu.memory_space<vmem>>, vector<8x384xbf16>
    tpu.vector_store %arg10[%c80, %c0_31], %26 {strides = array<i32>} : memref<200x384xbf16, #tpu.memory_space<vmem>>, vector<8x384xbf16>,
    %c0_32 = arith.constant 0 : index
    %c2 = arith.constant 2 : index
    %28 = vector.load %arg9[%c0_32, %c2] : memref<8x512xbf16, #tpu.memory_space<vmem>>, vector<8x384xbf16>
    %c88 = arith.constant 88 : index
    %c0_33 = arith.constant 0 : index
    %29 = vector.load %arg10[%c88, %c0_33] : memref<200x384xbf16, #tpu.memory_space<vmem>>, vector<8x384xbf16>
    tpu.vector_store %arg10[%c88, %c0_33], %28 {strides = array<i32>} : memref<200x384xbf16, #tpu.memory_space<vmem>>, vector<8x384xbf16>,
    %c0_34 = arith.constant 0 : index
    %c3 = arith.constant 3 : index
    %30 = vector.load %arg9[%c0_34, %c3] : memref<8x512xbf16, #tpu.memory_space<vmem>>, vector<8x384xbf16>
    %c96 = arith.constant 96 : index
    %c0_35 = arith.constant 0 : index
    %31 = vector.load %arg10[%c96, %c0_35] : memref<200x384xbf16, #tpu.memory_space<vmem>>, vector<8x384xbf16>
    tpu.vector_store %arg10[%c96, %c0_35], %30 {strides = array<i32>} : memref<200x384xbf16, #tpu.memory_space<vmem>>, vector<8x384xbf16>,
    %c0_36 = arith.constant 0 : index
    %c4 = arith.constant 4 : index
    %32 = vector.load %arg9[%c0_36, %c4] : memref<8x512xbf16, #tpu.memory_space<vmem>>, vector<8x384xbf16>
    %c104 = arith.constant 104 : index
    %c0_37 = arith.constant 0 : index
    %33 = vector.load %arg10[%c104, %c0_37] : memref<200x384xbf16, #tpu.memory_space<vmem>>, vector<8x384xbf16>
    tpu.vector_store %arg10[%c104, %c0_37], %32 {strides = array<i32>} : memref<200x384xbf16, #tpu.memory_space<vmem>>, vector<8x384xbf16>,
    %c0_38 = arith.constant 0 : index
    %c20 = arith.constant 20 : index
    %34 = vector.load %arg9[%c0_38, %c20] : memref<8x512xbf16, #tpu.memory_space<vmem>>, vector<8x384xbf16>
    %c112 = arith.constant 112 : index
    %c0_39 = arith.constant 0 : index
    %35 = vector.load %arg10[%c112, %c0_39] : memref<200x384xbf16, #tpu.memory_space<vmem>>, vector<8x384xbf16>
    tpu.vector_store %arg10[%c112, %c0_39], %34 {strides = array<i32>} : memref<200x384xbf16, #tpu.memory_space<vmem>>, vector<8x384xbf16>,
    %c0_40 = arith.constant 0 : index
    %c24_41 = arith.constant 24 : index
    %36 = vector.load %arg9[%c0_40, %c24_41] : memref<8x512xbf16, #tpu.memory_space<vmem>>, vector<8x384xbf16>
    %c120 = arith.constant 120 : index
    %c0_42 = arith.constant 0 : index
    %37 = vector.load %arg10[%c120, %c0_42] : memref<200x384xbf16, #tpu.memory_space<vmem>>, vector<8x384xbf16>
    tpu.vector_store %arg10[%c120, %c0_42], %36 {strides = array<i32>} : memref<200x384xbf16, #tpu.memory_space<vmem>>, vector<8x384xbf16>,
    %c0_43 = arith.constant 0 : index
    %c40_44 = arith.constant 40 : index
    %38 = vector.load %arg9[%c0_43, %c40_44] : memref<8x512xbf16, #tpu.memory_space<vmem>>, vector<8x384xbf16>
    %c128 = arith.constant 128 : index
    %c0_45 = arith.constant 0 : index
    %39 = vector.load %arg10[%c128, %c0_45] : memref<200x384xbf16, #tpu.memory_space<vmem>>, vector<8x384xbf16>
    tpu.vector_store %arg10[%c128, %c0_45], %38 {strides = array<i32>} : memref<200x384xbf16, #tpu.memory_space<vmem>>, vector<8x384xbf16>,
    %c0_46 = arith.constant 0 : index
    %c44 = arith.constant 44 : index
    %40 = vector.load %arg9[%c0_46, %c44] : memref<8x512xbf16, #tpu.memory_space<vmem>>, vector<8x384xbf16>
    %c136 = arith.constant 136 : index
    %c0_47 = arith.constant 0 : index
    %41 = vector.load %arg10[%c136, %c0_47] : memref<200x384xbf16, #tpu.memory_space<vmem>>, vector<8x384xbf16>
    tpu.vector_store %arg10[%c136, %c0_47], %40 {strides = array<i32>} : memref<200x384xbf16, #tpu.memory_space<vmem>>, vector<8x384xbf16>,
    %c0_48 = arith.constant 0 : index
    %c60 = arith.constant 60 : index
    %42 = vector.load %arg9[%c0_48, %c60] : memref<8x512xbf16, #tpu.memory_space<vmem>>, vector<8x384xbf16>
    %c144 = arith.constant 144 : index
    %c0_49 = arith.constant 0 : index
    %43 = vector.load %arg10[%c144, %c0_49] : memref<200x384xbf16, #tpu.memory_space<vmem>>, vector<8x384xbf16>
    tpu.vector_store %arg10[%c144, %c0_49], %42 {strides = array<i32>} : memref<200x384xbf16, #tpu.memory_space<vmem>>, vector<8x384xbf16>,
    %c0_50 = arith.constant 0 : index
    %c64_51 = arith.constant 64 : index
    %44 = vector.load %arg9[%c0_50, %c64_51] : memref<8x512xbf16, #tpu.memory_space<vmem>>, vector<8x384xbf16>
    %c152 = arith.constant 152 : index
    %c0_52 = arith.constant 0 : index
    %45 = vector.load %arg10[%c152, %c0_52] : memref<200x384xbf16, #tpu.memory_space<vmem>>, vector<8x384xbf16>
    tpu.vector_store %arg10[%c152, %c0_52], %44 {strides = array<i32>} : memref<200x384xbf16, #tpu.memory_space<vmem>>, vector<8x384xbf16>,
    %c0_53 = arith.constant 0 : index
    %c80_54 = arith.constant 80 : index
    %46 = vector.load %arg9[%c0_53, %c80_54] : memref<8x512xbf16, #tpu.memory_space<vmem>>, vector<8x384xbf16>
    %c160 = arith.constant 160 : index
    %c0_55 = arith.constant 0 : index
    %47 = vector.load %arg10[%c160, %c0_55] : memref<200x384xbf16, #tpu.memory_space<vmem>>, vector<8x384xbf16>
    tpu.vector_store %arg10[%c160, %c0_55], %46 {strides = array<i32>} : memref<200x384xbf16, #tpu.memory_space<vmem>>, vector<8x384xbf16>,
    %c0_56 = arith.constant 0 : index
    %c81 = arith.constant 81 : index
    %48 = vector.load %arg9[%c0_56, %c81] : memref<8x512xbf16, #tpu.memory_space<vmem>>, vector<8x384xbf16>
    %c168 = arith.constant 168 : index
    %c0_57 = arith.constant 0 : index
    %49 = vector.load %arg10[%c168, %c0_57] : memref<200x384xbf16, #tpu.memory_space<vmem>>, vector<8x384xbf16>
    tpu.vector_store %arg10[%c168, %c0_57], %48 {strides = array<i32>} : memref<200x384xbf16, #tpu.memory_space<vmem>>, vector<8x384xbf16>,
    %c0_58 = arith.constant 0 : index
    %c82 = arith.constant 82 : index
    %50 = vector.load %arg9[%c0_58, %c82] : memref<8x512xbf16, #tpu.memory_space<vmem>>, vector<8x384xbf16>
    %c176 = arith.constant 176 : index
    %c0_59 = arith.constant 0 : index
    %51 = vector.load %arg10[%c176, %c0_59] : memref<200x384xbf16, #tpu.memory_space<vmem>>, vector<8x384xbf16>
    tpu.vector_store %arg10[%c176, %c0_59], %50 {strides = array<i32>} : memref<200x384xbf16, #tpu.memory_space<vmem>>, vector<8x384xbf16>,
    %c0_60 = arith.constant 0 : index
    %c83 = arith.constant 83 : index
    %52 = vector.load %arg9[%c0_60, %c83] : memref<8x512xbf16, #tpu.memory_space<vmem>>, vector<8x384xbf16>
    %c184 = arith.constant 184 : index
    %c0_61 = arith.constant 0 : index
    %53 = vector.load %arg10[%c184, %c0_61] : memref<200x384xbf16, #tpu.memory_space<vmem>>, vector<8x384xbf16>
    tpu.vector_store %arg10[%c184, %c0_61], %52 {strides = array<i32>} : memref<200x384xbf16, #tpu.memory_space<vmem>>, vector<8x384xbf16>,
    %c0_62 = arith.constant 0 : index
    %c84 = arith.constant 84 : index
    %54 = vector.load %arg9[%c0_62, %c84] : memref<8x512xbf16, #tpu.memory_space<vmem>>, vector<8x384xbf16>
    %c192 = arith.constant 192 : index
    %c0_63 = arith.constant 0 : index
    %55 = vector.load %arg10[%c192, %c0_63] : memref<200x384xbf16, #tpu.memory_space<vmem>>, vector<8x384xbf16>
    tpu.vector_store %arg10[%c192, %c0_63], %54 {strides = array<i32>} : memref<200x384xbf16, #tpu.memory_space<vmem>>, vector<8x384xbf16>,
    %c0_64 = arith.constant 0 : index
    %c0_65 = arith.constant 0 : index
    %56 = vector.load %arg4[%c0_64, %c0_65] : memref<8x8xbf16, #tpu.memory_space<vmem>>, vector<8x8xbf16>
    %c0_66 = arith.constant 0 : index
    %c0_67 = arith.constant 0 : index
    %57 = vector.load %arg10[%c0_66, %c0_67] : memref<200x384xbf16, #tpu.memory_space<vmem>>, vector<8x384xbf16>
    %cst = arith.constant dense<0.000000e+00> : vector<8x384xf32>
    %58 = tpu.matmul %56, %57, %cst {dimension_numbers = #tpu.dot_dimension_numbers<[1], [0], [0], [1], [0, 0, 1, 1], [], []>} : vector<8x8xbf16>, vector<8x384xbf16>, vector<8x384xf32> -> vector<8x384xf32>
    %c0_68 = arith.constant 0 : index
    %c0_69 = arith.constant 0 : index
    %59 = vector.load %arg7[%c0_68, %c0_69] : memref<24x1xf32, #tpu.memory_space<vmem>>, vector<8x1xf32>
    %60 = vector.broadcast %59 : vector<8x1xf32> to vector<8x384xf32>
    %61 = arith.addf %58, %60 : vector<8x384xf32>
    %c0_70 = arith.constant 0 : index
    %c0_71 = arith.constant 0 : index
    %c0_72 = arith.constant 0 : index
    %62 = vector.load %arg8[%c0_70, %c0_71, %c0_72] : memref<1x24x384xf32, #tpu.memory_space<vmem>>, vector<1x8x384xf32>
    %63 = vector.shape_cast %62 : vector<1x8x384xf32> to vector<8x384xf32>
    %64 = vector.shape_cast %61 : vector<8x384xf32> to vector<1x8x384xf32>
    tpu.vector_store %arg8[%c0_70, %c0_71, %c0_72], %64 {strides = array<i32>} : memref<1x24x384xf32, #tpu.memory_space<vmem>>, vector<1x8x384xf32>,
    %c0_73 = arith.constant 0 : index
    %c0_74 = arith.constant 0 : index
    %65 = vector.load %arg5[%c0_73, %c0_74] : memref<8x72xbf16, #tpu.memory_space<vmem>>, vector<8x72xbf16>
    %c0_75 = arith.constant 0 : index
    %c0_76 = arith.constant 0 : index
    %66 = vector.load %arg10[%c0_75, %c0_76] : memref<200x384xbf16, #tpu.memory_space<vmem>>, vector<72x384xbf16>
    %cst_77 = arith.constant dense<0.000000e+00> : vector<8x384xf32>
    %67 = tpu.matmul %65, %66, %cst_77 {dimension_numbers = #tpu.dot_dimension_numbers<[1], [0], [0], [1], [0, 0, 1, 1], [], []>} : vector<8x72xbf16>, vector<72x384xbf16>, vector<8x384xf32> -> vector<8x384xf32>
    %c8_78 = arith.constant 8 : index
    %c0_79 = arith.constant 0 : index
    %68 = vector.load %arg7[%c8_78, %c0_79] : memref<24x1xf32, #tpu.memory_space<vmem>>, vector<8x1xf32>
    %69 = vector.broadcast %68 : vector<8x1xf32> to vector<8x384xf32>
    %70 = arith.addf %67, %69 : vector<8x384xf32>
    %c0_80 = arith.constant 0 : index
    %c8_81 = arith.constant 8 : index
    %c0_82 = arith.constant 0 : index
    %71 = vector.load %arg8[%c0_80, %c8_81, %c0_82] : memref<1x24x384xf32, #tpu.memory_space<vmem>>, vector<1x8x384xf32>
    %72 = vector.shape_cast %71 : vector<1x8x384xf32> to vector<8x384xf32>
    %73 = vector.shape_cast %70 : vector<8x384xf32> to vector<1x8x384xf32>
    tpu.vector_store %arg8[%c0_80, %c8_81, %c0_82], %73 {strides = array<i32>} : memref<1x24x384xf32, #tpu.memory_space<vmem>>, vector<1x8x384xf32>,
    %c0_83 = arith.constant 0 : index
    %c0_84 = arith.constant 0 : index
    %74 = vector.load %arg6[%c0_83, %c0_84] : memref<8x200xbf16, #tpu.memory_space<vmem>>, vector<8x200xbf16>
    %c0_85 = arith.constant 0 : index
    %c0_86 = arith.constant 0 : index
    %75 = vector.load %arg10[%c0_85, %c0_86] : memref<200x384xbf16, #tpu.memory_space<vmem>>, vector<200x384xbf16>
    %cst_87 = arith.constant dense<0.000000e+00> : vector<8x384xf32>
    %76 = tpu.matmul %74, %75, %cst_87 {dimension_numbers = #tpu.dot_dimension_numbers<[1], [0], [0], [1], [0, 0, 1, 1], [], []>} : vector<8x200xbf16>, vector<200x384xbf16>, vector<8x384xf32> -> vector<8x384xf32>
    %c16_88 = arith.constant 16 : index
    %c0_89 = arith.constant 0 : index
    %77 = vector.load %arg7[%c16_88, %c0_89] : memref<24x1xf32, #tpu.memory_space<vmem>>, vector<8x1xf32>
    %78 = vector.broadcast %77 : vector<8x1xf32> to vector<8x384xf32>
    %79 = arith.addf %76, %78 : vector<8x384xf32>
    %c0_90 = arith.constant 0 : index
    %c16_91 = arith.constant 16 : index
    %c0_92 = arith.constant 0 : index
    %80 = vector.load %arg8[%c0_90, %c16_91, %c0_92] : memref<1x24x384xf32, #tpu.memory_space<vmem>>, vector<1x8x384xf32>
    %81 = vector.shape_cast %80 : vector<1x8x384xf32> to vector<8x384xf32>
    %82 = vector.shape_cast %79 : vector<8x384xf32> to vector<1x8x384xf32>
    tpu.vector_store %arg8[%c0_90, %c16_91, %c0_92], %82 {strides = array<i32>} : memref<1x24x384xf32, #tpu.memory_space<vmem>>, vector<1x8x384xf32>,
    return
  }
  func.func @transform_0(%arg0: i32, %arg1: i32) -> (i32, i32, i32) {
    %c0_i32 = arith.constant 0 : i32
    %c0_i32_0 = arith.constant 0 : i32
    return %arg0, %c0_i32, %arg1 : i32, i32, i32
  }
  func.func @transform_1(%arg0: i32, %arg1: i32) -> (i32, i32, i32) {
    %c0_i32 = arith.constant 0 : i32
    %c0_i32_0 = arith.constant 0 : i32
    return %arg0, %c0_i32, %arg1 : i32, i32, i32
  }
  func.func @transform_2(%arg0: i32, %arg1: i32) -> (i32, i32) {
    %c0_i32 = arith.constant 0 : i32
    %c0_i32_0 = arith.constant 0 : i32
    %c0_i32_1 = arith.constant 0 : i32
    return %c0_i32, %c0_i32_0 : i32, i32
  }
  func.func @transform_3(%arg0: i32, %arg1: i32) -> (i32, i32) {
    %c0_i32 = arith.constant 0 : i32
    %c0_i32_0 = arith.constant 0 : i32
    %c0_i32_1 = arith.constant 0 : i32
    return %c0_i32, %c0_i32_0 : i32, i32
  }
  func.func @transform_4(%arg0: i32, %arg1: i32) -> (i32, i32) {
    %c0_i32 = arith.constant 0 : i32
    %c0_i32_0 = arith.constant 0 : i32
    %c0_i32_1 = arith.constant 0 : i32
    return %c0_i32, %c0_i32_0 : i32, i32
  }
  func.func @transform_5(%arg0: i32, %arg1: i32) -> (i32, i32) {
    %c0_i32 = arith.constant 0 : i32
    %c0_i32_0 = arith.constant 0 : i32
    %c0_i32_1 = arith.constant 0 : i32
    return %c0_i32, %c0_i32_0 : i32, i32
  }
  func.func @transform_6(%arg0: i32, %arg1: i32) -> (i32, i32, i32) {
    %c0_i32 = arith.constant 0 : i32
    %c0_i32_0 = arith.constant 0 : i32
    return %arg0, %c0_i32, %arg1 : i32, i32, i32
  }
}

</mosaic_0001>

<llo_original>
// kernel: tpu_custom_call.1
$region0: #{tpu_custom_call.1}
  #allocation0 [shape = 'u32[]', space=smem, size = 0x4, offset = 0x4, fixed_abs, tag = 'smem constant byte address 0x4 - core index']
  #allocation1 [shape = 'u32[144,128]{1,0:T(1,128)}', space=vmem, size = 0x12000, scoped, tag = 'internal scratch']
  #allocation2 [shape = 'bf16[8,512]{1,0:T(8,128)(2,1)}', space=vmem, size = 0x2000, scoped, tag = 'scratch operand']
  #allocation3 [shape = 'bf16[200,384]{1,0:T(8,128)(2,1)}', space=vmem, size = 0x25800, scoped, tag = 'scratch operand']
  %s0 = inlined_call_operand.hbm [shape: bf16[2,8,768], index: 0, kind: input, shape index: {}]
  %s1 = inlined_call_operand.vmem [shape: bf16[2,8,128], index: 1, kind: input, shape index: {}]
  %s2 = inlined_call_operand.vmem [shape: bf16[8,8], index: 2, kind: input, shape index: {}]
  %s3 = inlined_call_operand.vmem [shape: bf16[8,72], index: 3, kind: input, shape index: {}]
  %s4 = inlined_call_operand.vmem [shape: bf16[8,200], index: 4, kind: input, shape index: {}]
  %s5 = inlined_call_operand.vmem [shape: f32[24,1], index: 5, kind: input, shape index: {}]
  %s6 = inlined_call_operand.hbm [shape: f32[2,24,384], index: 6, kind: output, shape index: {}]
  %s7 = sld [smem:[#allocation0]]
  $region61: #{tpu_custom_call.1} parent=0
    _
  %s9 = ssub.s32 1, %s7
  %s10 = scalar_select 0, %s9, %s7
  $region1: #{tpu_custom_call.1} parent=0
    #allocation4 [shape = 'u8[12288]{0}', space=vmem, size = 0x3000, scoped, tag = 'input window, operand 0']
    #allocation5 [shape = 's32[2]{0}', space=sflag, size = 0x8, scoped, tag = 'scoped memory for tpu_custom_call.1']
    #allocation6 [shape = 's32[2]{0}', space=sflag, size = 0x8, scoped, tag = 'scoped memory for tpu_custom_call.1']
    #allocation7 [shape = 'u8[73728]{0}', space=vmem, size = 0x12000, scoped, tag = 'output window, operand 0']
    %11 = vsyncpa [#allocation5], 0
    %s12 = scalar_lea.sflag [#allocation5], 1
    %13 = vsyncpa %s12, 0
    %14 = vsyncpa [#allocation6], 0
    %s15 = scalar_lea.sflag [#allocation6], 1
    %16 = vsyncpa %s15, 0
    loop: start=0, step=1, limit=4
    $region2: #{tpu_custom_call.1} parent=1 // loop_pre_header
      _
    $region3: #{tpu_custom_call.1} parent=1 // loop_header
      %s18 = sphi 0, %s22
      %p19 = scmp.ge.s32.totalorder %s18, 4
      %s25 = sphi 0, %s37
      %s26 = sphi 0, %s33
      %s27 = sphi 0, %s25
      %s28 = sphi 0, %s26
      %s29 = sphi 0, %s27
      %s30 = sphi 0, %s28
      %s42 = sphi 0, %s44
      %s45 = sphi 0, %s42
      %s46 = sphi 0, %s45
      %s62 = sphi 0, %s46
      %s70 = sphi 0, %s72
      %s73 = sphi 0, %s70
      %s74 = sphi 0, %s73
      %s90 = sphi 0, %s74
      %s94 = sphi 0, %s94
      %s96 = sphi 0, %s94
      %s97 = sphi 0, %s96
      %s111 = sphi 0, %s97
      %s115 = sphi 0, %s115
      %s117 = sphi 0, %s115
      %s118 = sphi 0, %s117
      %s132 = sphi 0, %s118
      %s136 = sphi 0, %s136
      %s138 = sphi 0, %s136
      %s139 = sphi 0, %s138
      %s153 = sphi 0, %s139
      %s157 = sphi 0, %s157
      %s159 = sphi 0, %s157
      %s160 = sphi 0, %s159
      %s174 = sphi 0, %s160
      %s182 = sphi 0, %s184
      %s185 = sphi 0, %s182
      %s186 = sphi 0, %s185
      %s202 = sphi 0, %s186
    $region4: #{tpu_custom_call.1} parent=1 // loop_header_branch
      %21 = sbr.rel (%p19) target = $region8
    $region5: #{tpu_custom_call.1} parent=1 // loop_body
      %s23 = ssub.s32 %s18, 1
      %s24 = ssub.s32 %s18, 2
      %s31 = sadd.s32 1, %s26
      %p32 = scmp.ge.s32.totalorder %s31, 1
      %s33 = scalar_select %p32, 0, %s31
      %s34 = sadd.s32 1, %s25
      %s35 = scalar_select %p32, %s34, %s25
      %p36 = scmp.ge.s32.totalorder %s35, 2
      %s37 = scalar_select %p36, 0, %s35
      %s38 = ssub.s32 %s25, %s37
      %s39 = ssub.s32 %s26, %s33
      %s40 = sor.u32 %s38, %s39
      %p41 = scmp.eq.s32.totalorder %s40, 0
      %s43 = sadd.s32 %s42, 1
      %s44 = scalar_select %p41, %s42, %s43
      %p47 = pneg %p41
      %p48 = scmp.eq.s32.totalorder %s18, 1
      %p49 = por %p47, %p48
      %p50 = scmp.ne.s32.totalorder %s42, %s45
      %p51 = scmp.eq.s32.totalorder %s18, 0
      %p52 = por %p50, %p51
      %p53 = scmp.ne.s32.totalorder %s42, %s45
      %p54 = scmp.eq.s32.totalorder %s23, 1
      %p55 = por %p53, %p54
      %p56 = scmp.ne.s32.totalorder %s45, %s46
      %p57 = scmp.eq.s32.totalorder %s23, 0
      %p58 = por %p56, %p57
      %p59 = scmp.ne.s32.totalorder %s45, %s46
      %p60 = scmp.eq.s32.totalorder %s24, 1
      %p61 = por %p59, %p60
      %p63 = scmp.ne.s32.totalorder %s46, %s62
      %p64 = scmp.eq.s32.totalorder %s24, 0
      %p65 = por %p63, %p64
      %s66 = ssub.s32 %s25, %s37
      %s67 = ssub.s32 %s26, %s33
      %s68 = sor.u32 %s66, %s67
      %p69 = scmp.eq.s32.totalorder %s68, 0
      %s71 = sadd.s32 %s70, 1
      %s72 = scalar_select %p69, %s70, %s71
      %p75 = pneg %p69
      %p76 = scmp.eq.s32.totalorder %s18, 1
      %p77 = por %p75, %p76
      %p78 = scmp.ne.s32.totalorder %s70, %s73
      %p79 = scmp.eq.s32.totalorder %s18, 0
      %p80 = por %p78, %p79
      %p81 = scmp.ne.s32.totalorder %s70, %s73
      %p82 = scmp.eq.s32.totalorder %s23, 1
      %p83 = por %p81, %p82
      %p84 = scmp.ne.s32.totalorder %s73, %s74
      %p85 = scmp.eq.s32.totalorder %s23, 0
      %p86 = por %p84, %p85
      %p87 = scmp.ne.s32.totalorder %s73, %s74
      %p88 = scmp.eq.s32.totalorder %s24, 1
      %p89 = por %p87, %p88
      %p91 = scmp.ne.s32.totalorder %s74, %s90
      %p92 = scmp.eq.s32.totalorder %s24, 0
      %p93 = por %p91, %p92
      %s95 = sadd.s32 %s94, 1
      %p98 = scmp.eq.s32.totalorder %s18, 1
      %p99 = scmp.ne.s32.totalorder %s94, %s96
      %p100 = scmp.eq.s32.totalorder %s18, 0
      %p101 = por %p99, %p100
      %p102 = scmp.ne.s32.totalorder %s94, %s96
      %p103 = scmp.eq.s32.totalorder %s23, 1
      %p104 = por %p102, %p103
      %p105 = scmp.ne.s32.totalorder %s96, %s97
      %p106 = scmp.eq.s32.totalorder %s23, 0
      %p107 = por %p105, %p106
      %p108 = scmp.ne.s32.totalorder %s96, %s97
      %p109 = scmp.eq.s32.totalorder %s24, 1
      %p110 = por %p108, %p109
      %p112 = scmp.ne.s32.totalorder %s97, %s111
      %p113 = scmp.eq.s32.totalorder %s24, 0
      %p114 = por %p112, %p113
      %s116 = sadd.s32 %s115, 1
      %p119 = scmp.eq.s32.totalorder %s18, 1
      %p120 = scmp.ne.s32.totalorder %s115, %s117
      %p121 = scmp.eq.s32.totalorder %s18, 0
      %p122 = por %p120, %p121
      %p123 = scmp.ne.s32.totalorder %s115, %s117
      %p124 = scmp.eq.s32.totalorder %s23, 1
      %p125 = por %p123, %p124
      %p126 = scmp.ne.s32.totalorder %s117, %s118
      %p127 = scmp.eq.s32.totalorder %s23, 0
      %p128 = por %p126, %p127
      %p129 = scmp.ne.s32.totalorder %s117, %s118
      %p130 = scmp.eq.s32.totalorder %s24, 1
      %p131 = por %p129, %p130
      %p133 = scmp.ne.s32.totalorder %s118, %s132
      %p134 = scmp.eq.s32.totalorder %s24, 0
      %p135 = por %p133, %p134
      %s137 = sadd.s32 %s136, 1
      %p140 = scmp.eq.s32.totalorder %s18, 1
      %p141 = scmp.ne.s32.totalorder %s136, %s138
      %p142 = scmp.eq.s32.totalorder %s18, 0
      %p143 = por %p141, %p142
      %p144 = scmp.ne.s32.totalorder %s136, %s138
      %p145 = scmp.eq.s32.totalorder %s23, 1
      %p146 = por %p144, %p145
      %p147 = scmp.ne.s32.totalorder %s138, %s139
      %p148 = scmp.eq.s32.totalorder %s23, 0
      %p149 = por %p147, %p148
      %p150 = scmp.ne.s32.totalorder %s138, %s139
      %p151 = scmp.eq.s32.totalorder %s24, 1
      %p152 = por %p150, %p151
      %p154 = scmp.ne.s32.totalorder %s139, %s153
      %p155 = scmp.eq.s32.totalorder %s24, 0
      %p156 = por %p154, %p155
      %s158 = sadd.s32 %s157, 1
      %p161 = scmp.eq.s32.totalorder %s18, 1
      %p162 = scmp.ne.s32.totalorder %s157, %s159
      %p163 = scmp.eq.s32.totalorder %s18, 0
      %p164 = por %p162, %p163
      %p165 = scmp.ne.s32.totalorder %s157, %s159
      %p166 = scmp.eq.s32.totalorder %s23, 1
      %p167 = por %p165, %p166
      %p168 = scmp.ne.s32.totalorder %s159, %s160
      %p169 = scmp.eq.s32.totalorder %s23, 0
      %p170 = por %p168, %p169
      %p171 = scmp.ne.s32.totalorder %s159, %s160
      %p172 = scmp.eq.s32.totalorder %s24, 1
      %p173 = por %p171, %p172
      %p175 = scmp.ne.s32.totalorder %s160, %s174
      %p176 = scmp.eq.s32.totalorder %s24, 0
      %p177 = por %p175, %p176
      %s178 = ssub.s32 %s25, %s37
      %s179 = ssub.s32 %s26, %s33
      %s180 = sor.u32 %s178, %s179
      %p181 = scmp.eq.s32.totalorder %s180, 0
      %s183 = sadd.s32 %s182, 1
      %s184 = scalar_select %p181, %s182, %s183
      %p187 = pneg %p181
      %p188 = scmp.eq.s32.totalorder %s18, 1
      %p189 = por %p187, %p188
      %p190 = scmp.ne.s32.totalorder %s182, %s185
      %p191 = scmp.eq.s32.totalorder %s18, 0
      %p192 = por %p190, %p191
      %p193 = scmp.ne.s32.totalorder %s182, %s185
      %p194 = scmp.eq.s32.totalorder %s23, 1
      %p195 = por %p193, %p194
      %p196 = scmp.ne.s32.totalorder %s185, %s186
      %p197 = scmp.eq.s32.totalorder %s23, 0
      %p198 = por %p196, %p197
      %p199 = scmp.ne.s32.totalorder %s185, %s186
      %p200 = scmp.eq.s32.totalorder %s24, 1
      %p201 = por %p199, %p200
      %p203 = scmp.ne.s32.totalorder %s186, %s202
      %p204 = scmp.eq.s32.totalorder %s24, 0
      %p205 = por %p203, %p204
      %p206 = scmp.le.s32.totalorder 1, %s18
      %p207 = scmp.lt.s32.totalorder %s18, 3
      %p208 = pnand %p206, %p207
      %p209 = pneg %p208
      // Predicated region
      $region9: #{tpu_custom_call.1} parent=5 // pred_check
        _
      $region10: #{tpu_custom_call.1} parent=5 // pred_check_branch
        %211 = sbr.rel (%p208) target = $region12
      $region11: #{tpu_custom_call.1} parent=5 // pred_region
        %s212 = ssub.s32 %s18, 1
        // Predicated region
        $region13: #{tpu_custom_call.1} parent=11 // pred_check
          %p213 = pneg %p107
        $region14: #{tpu_custom_call.1} parent=11 // pred_check_branch
          %215 = sbr.rel (%p213) target = $region16
        $region15: #{tpu_custom_call.1} parent=11 // pred_region
          _
        $region16: #{tpu_custom_call.1} parent=11 // pred_fallthru
          _
        // Predicated region
        $region17: #{tpu_custom_call.1} parent=11 // pred_check
          %p216 = pneg %p128
        $region18: #{tpu_custom_call.1} parent=11 // pred_check_branch
          %218 = sbr.rel (%p216) target = $region20
        $region19: #{tpu_custom_call.1} parent=11 // pred_region
          _
        $region20: #{tpu_custom_call.1} parent=11 // pred_fallthru
          _
        // Predicated region
        $region21: #{tpu_custom_call.1} parent=11 // pred_check
          %p219 = pneg %p149
        $region22: #{tpu_custom_call.1} parent=11 // pred_check_branch
          %221 = sbr.rel (%p219) target = $region24
        $region23: #{tpu_custom_call.1} parent=11 // pred_region
          _
        $region24: #{tpu_custom_call.1} parent=11 // pred_fallthru
          _
        // Predicated region
        $region25: #{tpu_custom_call.1} parent=11 // pred_check
          %p222 = pneg %p170
        $region26: #{tpu_custom_call.1} parent=11 // pred_check_branch
          %224 = sbr.rel (%p222) target = $region28
        $region27: #{tpu_custom_call.1} parent=11 // pred_region
          _
        $region28: #{tpu_custom_call.1} parent=11 // pred_fallthru
          _
      $region12: #{tpu_custom_call.1} parent=5 // pred_fallthru
        _
      %p225 = scmp.lt.s32.totalorder %s18, 2
      // Predicated region
      $region29: #{tpu_custom_call.1} parent=5 // pred_check
        %p226 = pneg %p225
      $region30: #{tpu_custom_call.1} parent=5 // pred_check_branch
        %228 = sbr.rel (%p226) target = $region32
      $region31: #{tpu_custom_call.1} parent=5 // pred_region
        // Predicated region
        $region33: #{tpu_custom_call.1} parent=31 // pred_check
          %p229 = pneg %p52
        $region34: #{tpu_custom_call.1} parent=31 // pred_check_branch
          %231 = sbr.rel (%p229) target = $region36
        $region35: #{tpu_custom_call.1} parent=31 // pred_region
          %s232 = sand.u32 %s42, 1
          %s233 = scalar_lea.sflag [#allocation5], %s232
          %s234 = sand.u32 %s42, 1
          %s235 = smul.addr %s234, 12
          %s236 = scalar_lea.vmem [#allocation4], %s235
          %s237 = smul.u32 3, %s26
          %s239 = ssub.s32 192, 192
          %240 = vsyncadd %s233, %s239
          %s241 = smul.addr %s25, 6
          %s242 = sadd.s32 %s237, %s241
          %s243 = smul.addr %s242, 64
          %s244 = scalar_lea.hbm %s0, %s243
          %s246 = sshll.u32 %s236, 4
          %s247 = int_to_ptr.vmem [resolvable:$true] %s246
          %249 = dma.hbm_to_vmem [thread:$0]  %s244, 192, %s247, %s233
        $region36: #{tpu_custom_call.1} parent=31 // pred_fallthru
          _
        // Predicated region
        $region37: #{tpu_custom_call.1} parent=31 // pred_check
          %p250 = pneg %p80
        $region38: #{tpu_custom_call.1} parent=31 // pred_check_branch
          %252 = sbr.rel (%p250) target = $region40
        $region39: #{tpu_custom_call.1} parent=31 // pred_region
          %p253 = scmp.lt.s32.totalorder %s25, 1
          %s254 = scalar_select %p253, %s25, 1
          %p255 = scmp.lt.s32.totalorder %s26, 0
          %s256 = scalar_select %p255, %s26, 0
          %s257 = sadd.s32 %s256, %s254
          %s258 = smul.addr %s257, 4
          %s259 = scalar_lea.vmem %s1, %s258
        $region40: #{tpu_custom_call.1} parent=31 // pred_fallthru
          _
      $region32: #{tpu_custom_call.1} parent=5 // pred_fallthru
        _
      %p260 = scmp.le.s32.totalorder 1, %s18
      %p261 = scmp.lt.s32.totalorder %s18, 3
      %p262 = pnand %p260, %p261
      %p263 = pneg %p262
      // Predicated region
      $region41: #{tpu_custom_call.1} parent=5 // pred_check
        _
      $region42: #{tpu_custom_call.1} parent=5 // pred_check_branch
        %265 = sbr.rel (%p262) target = $region44
      $region43: #{tpu_custom_call.1} parent=5 // pred_region
        %s266 = ssub.s32 %s18, 1
        %s267 = sand.u32 %s45, 1
        %s268 = scalar_lea.sflag [#allocation5], %s267
        %s269 = sand.u32 %s45, 1
        %s270 = smul.addr %s269, 12
        %s271 = scalar_lea.vmem [#allocation4], %s270
        // Predicated region
        $region45: #{tpu_custom_call.1} parent=43 // pred_check
          %p272 = pneg %p58
        $region46: #{tpu_custom_call.1} parent=43 // pred_check_branch
          %274 = sbr.rel (%p272) target = $region48
        $region47: #{tpu_custom_call.1} parent=43 // pred_region
          %275 = dma.done %s268, 192
        $region48: #{tpu_custom_call.1} parent=43 // pred_fallthru
          _
        %s276 = sand.u32 %s45, 1
        %s277 = scalar_lea.sflag [#allocation5], %s276
        %s278 = sand.u32 %s45, 1
        %s279 = smul.addr %s278, 12
        %s280 = scalar_lea.vmem [#allocation4], %s279
        %p281 = pneg %p58
        %p282 = pneg %p55
        %p283 = scmp.lt.s32.totalorder %s27, 1
        %s284 = scalar_select %p283, %s27, 1
        %p285 = scmp.lt.s32.totalorder %s28, 0
        %s286 = scalar_select %p285, %s28, 0
        %s287 = sadd.s32 %s286, %s284
        %s288 = smul.addr %s287, 4
        %s289 = scalar_lea.vmem %s1, %s288
        %p290 = pneg %p86
        %p291 = pneg %p83
        %p292 = pneg %p107
        %p293 = pneg %p104
        %p294 = pneg %p128
        %p295 = pneg %p125
        %p296 = pneg %p149
        %p297 = pneg %p146
        %p298 = pneg %p170
        %p299 = pneg %p167
        %p300 = pneg %p198
        %p301 = pneg %p195
        %s302 = sand.u32 %s185, 1
        %s303 = scalar_lea.sflag [#allocation6], %s302
        %s304 = sand.u32 %s185, 1
        %s305 = smul.addr %s304, 72
        %s306 = scalar_lea.vmem [#allocation7], %s305
        %s307 = smul.u32 3, %s28
        %p308 = scmp.lt.s32.totalorder %s27, 1
        %s309 = scalar_select %p308, %s27, 1
        %p310 = scmp.lt.s32.totalorder %s28, 0
        %s311 = scalar_select %p310, %s28, 0
        %s312 = sadd.s32 %s311, %s309
        %s313 = smul.addr %s312, 4
        %s314 = scalar_lea.vmem %s1, %s313
        %s315 = smul.u32 3, %s28
        %v317 = vld [vmem:[%s271] sm:$0xff]
        %v318 = vld [vmem:[%s271 + $0x8] sm:$0xf]
        %319 = vst [vmem:[#allocation2] sm:$0xff] %v317
        %320 = vst [vmem:[#allocation2 + $0x8] sm:$0xf] %v318
        %v321 = vld [vmem:[%s314] sm:$0xf]
        %322 = vst [vmem:[#allocation2 + $0xc] sm:$0xf] %v321
        %v323 = vld [vmem:[#allocation2] sm:$0xff]
        %v324 = vld [vmem:[#allocation2 + $0x8] sm:$0xff]
        %327 = vrot.lane.b32.xlu0 %v323, 86
        %v328 = vpop.permute.xlu0 %327
        %329 = vrot.lane.b32.xlu0 %v324, 86
        %v330 = vpop.permute.xlu0 %329
        %v331 = vrot.slane %v328, 4
        %v332 = vrot.slane %v330, 4
        %vm333 = vcmask 1043456
        %v334 = vsel %vm333, %v331, %v332
        %vm335 = vcmask 703488
        %v336 = vsel %vm335, %v328, %v334
        %v337 = vsel %vm335, %v330, %v332
        %340 = vst [vmem:[#allocation3] sm:$0xff] %v336
        %341 = vst [vmem:[#allocation3 + $0x8] sm:$0xf] %v337
        %v342 = vld [vmem:[#allocation2] sm:$0xff]
        %v343 = vld [vmem:[#allocation2 + $0x8] sm:$0xff]
        %346 = vrot.lane.b32.xlu0 %v342, 107
        %v347 = vpop.permute.xlu0 %346
        %348 = vrot.lane.b32.xlu0 %v343, 107
        %v349 = vpop.permute.xlu0 %348
        %v350 = vrot.slane %v347, 4
        %v351 = vrot.slane %v349, 4
        %v352 = vsel %vm333, %v350, %v351
        %vm353 = vcmask 875520
        %v354 = vsel %vm353, %v347, %v352
        %v355 = vsel %vm353, %v349, %v351
        %358 = vst [vmem:[#allocation3 + $0xc] sm:$0xff] %v354
        %359 = vst [vmem:[#allocation3 + $0x14] sm:$0xf] %v355
        %v360 = vld [vmem:[#allocation2] sm:$0xff]
        %v361 = vld [vmem:[#allocation2 + $0x8] sm:$0xff]
        %364 = vrot.lane.b32.xlu0 %v360, 106
        %v365 = vpop.permute.xlu0 %364
        %366 = vrot.lane.b32.xlu0 %v361, 106
        %v367 = vpop.permute.xlu0 %366
        %v368 = vrot.slane %v365, 4
        %v369 = vrot.slane %v367, 4
        %v370 = vsel %vm333, %v368, %v369
        %vm371 = vcmask 867328
        %v372 = vsel %vm371, %v365, %v370
        %v373 = vsel %vm371, %v367, %v369
        %376 = vst [vmem:[#allocation3 + $0x18] sm:$0xff] %v372
        %377 = vst [vmem:[#allocation3 + $0x20] sm:$0xf] %v373
        %v378 = vld [vmem:[#allocation2] sm:$0xff]
        %v379 = vld [vmem:[#allocation2 + $0x8] sm:$0xff]
        %382 = vrot.lane.b32.xlu0 %v378, 105
        %v383 = vpop.permute.xlu0 %382
        %384 = vrot.lane.b32.xlu0 %v379, 105
        %v385 = vpop.permute.xlu0 %384
        %v386 = vrot.slane %v383, 4
        %v387 = vrot.slane %v385, 4
        %v388 = vsel %vm333, %v386, %v387
        %vm389 = vcmask 859136
        %v390 = vsel %vm389, %v383, %v388
        %v391 = vsel %vm389, %v385, %v387
        %394 = vst [vmem:[#allocation3 + $0x24] sm:$0xff] %v390
        %395 = vst [vmem:[#allocation3 + $0x2c] sm:$0xf] %v391
        %v396 = vld [vmem:[#allocation2] sm:$0xff]
        %v397 = vld [vmem:[#allocation2 + $0x8] sm:$0xff]
        %400 = vrot.lane.b32.xlu0 %v396, 87
        %v401 = vpop.permute.xlu0 %400
        %402 = vrot.lane.b32.xlu0 %v397, 87
        %v403 = vpop.permute.xlu0 %402
        %v404 = vrot.slane %v401, 4
        %v405 = vrot.slane %v403, 4
        %v406 = vsel %vm333, %v404, %v405
        %vm407 = vcmask 711680
        %v408 = vsel %vm407, %v401, %v406
        %v409 = vsel %vm407, %v403, %v405
        %412 = vst [vmem:[#allocation3 + $0x30] sm:$0xff] %v408
        %413 = vst [vmem:[#allocation3 + $0x38] sm:$0xf] %v409
        %v414 = vld [vmem:[#allocation2] sm:$0xff]
        %v415 = vld [vmem:[#allocation2 + $0x8] sm:$0xff]
        %418 = vrot.lane.b32.xlu0 %v414, 85
        %v419 = vpop.permute.xlu0 %418
        %420 = vrot.lane.b32.xlu0 %v415, 85
        %v421 = vpop.permute.xlu0 %420
        %v422 = vrot.slane %v419, 4
        %v423 = vrot.slane %v421, 4
        %v424 = vsel %vm333, %v422, %v423
        %vm425 = vcmask 695296
        %v426 = vsel %vm425, %v419, %v424
        %v427 = vsel %vm425, %v421, %v423
        %430 = vst [vmem:[#allocation3 + $0x3c] sm:$0xff] %v426
        %431 = vst [vmem:[#allocation3 + $0x44] sm:$0xf] %v427
        %v432 = vld [vmem:[#allocation2] sm:$0xff]
        %v433 = vld [vmem:[#allocation2 + $0x8] sm:$0xff]
        %436 = vrot.lane.b32.xlu0 %v432, 67
        %v437 = vpop.permute.xlu0 %436
        %438 = vrot.lane.b32.xlu0 %v433, 67
        %v439 = vpop.permute.xlu0 %438
        %v440 = vrot.slane %v437, 4
        %v441 = vrot.slane %v439, 4
        %v442 = vsel %vm333, %v440, %v441
        %vm443 = vcmask 547840
        %v444 = vsel %vm443, %v437, %v442
        %v445 = vsel %vm443, %v439, %v441
        %448 = vst [vmem:[#allocation3 + $0x48] sm:$0xff] %v444
        %449 = vst [vmem:[#allocation3 + $0x50] sm:$0xf] %v445
        %v450 = vld [vmem:[#allocation2] sm:$0xff]
        %v451 = vld [vmem:[#allocation2 + $0x8] sm:$0xff]
        %454 = vrot.lane.b32.xlu0 %v450, 66
        %v455 = vpop.permute.xlu0 %454
        %456 = vrot.lane.b32.xlu0 %v451, 66
        %v457 = vpop.permute.xlu0 %456
        %v458 = vrot.slane %v455, 4
        %v459 = vrot.slane %v457, 4
        %v460 = vsel %vm333, %v458, %v459
        %vm461 = vcmask 539648
        %v462 = vsel %vm461, %v455, %v460
        %v463 = vsel %vm461, %v457, %v459
        %466 = vst [vmem:[#allocation3 + $0x54] sm:$0xff] %v462
        %467 = vst [vmem:[#allocation3 + $0x5c] sm:$0xf] %v463
        %v468 = vld [vmem:[#allocation2] sm:$0xff]
        %v469 = vld [vmem:[#allocation2 + $0x8] sm:$0xff]
        %472 = vrot.lane.b32.xlu0 %v468, 65
        %v473 = vpop.permute.xlu0 %472
        %474 = vrot.lane.b32.xlu0 %v469, 65
        %v475 = vpop.permute.xlu0 %474
        %v476 = vrot.slane %v473, 4
        %v477 = vrot.slane %v475, 4
        %v478 = vsel %vm333, %v476, %v477
        %vm479 = vcmask 531456
        %v480 = vsel %vm479, %v473, %v478
        %v481 = vsel %vm479, %v475, %v477
        %484 = vst [vmem:[#allocation3 + $0x60] sm:$0xff] %v480
        %485 = vst [vmem:[#allocation3 + $0x68] sm:$0xf] %v481
        %v486 = vld [vmem:[#allocation2] sm:$0xff]
        %v487 = vld [vmem:[#allocation2 + $0x8] sm:$0xf]
        %488 = vst [vmem:[#allocation3 + $0x6c] sm:$0xff] %v486
        %489 = vst [vmem:[#allocation3 + $0x74] sm:$0xf] %v487
        %v490 = vld [vmem:[#allocation2] sm:$0xff]
        %v491 = vld [vmem:[#allocation2 + $0x8] sm:$0xff]
        %494 = vrot.lane.b32.xlu0 %v490, 127
        %v495 = vpop.permute.xlu0 %494
        %496 = vrot.lane.b32.xlu0 %v491, 127
        %v497 = vpop.permute.xlu0 %496
        %v498 = vrot.slane %v495, 4
        %v499 = vrot.slane %v497, 4
        %v500 = vsel %vm333, %v498, %v499
        %vm501 = vcmask 1039360
        %v502 = vsel %vm501, %v495, %v500
        %v503 = vsel %vm501, %v497, %v499
        %506 = vst [vmem:[#allocation3 + $0x78] sm:$0xff] %v502
        %507 = vst [vmem:[#allocation3 + $0x80] sm:$0xf] %v503
        %v508 = vld [vmem:[#allocation2] sm:$0xff]
        %v509 = vld [vmem:[#allocation2 + $0x8] sm:$0xff]
        %512 = vrot.lane.b32.xlu0 %v508, 126
        %v513 = vpop.permute.xlu0 %512
        %514 = vrot.lane.b32.xlu0 %v509, 126
        %v515 = vpop.permute.xlu0 %514
        %v516 = vrot.slane %v513, 4
        %v517 = vrot.slane %v515, 4
        %v518 = vsel %vm333, %v516, %v517
        %vm519 = vcmask 1031168
        %v520 = vsel %vm519, %v513, %v518
        %v521 = vsel %vm519, %v515, %v517
        %524 = vst [vmem:[#allocation3 + $0x84] sm:$0xff] %v520
        %525 = vst [vmem:[#allocation3 + $0x8c] sm:$0xf] %v521
        %v526 = vld [vmem:[#allocation2] sm:$0xff]
        %v527 = vld [vmem:[#allocation2 + $0x8] sm:$0xff]
        %530 = vrot.lane.b32.xlu0 %v526, 125
        %v531 = vpop.permute.xlu0 %530
        %532 = vrot.lane.b32.xlu0 %v527, 125
        %v533 = vpop.permute.xlu0 %532
        %v534 = vrot.slane %v531, 4
        %v535 = vrot.slane %v533, 4
        %v536 = vsel %vm333, %v534, %v535
        %vm537 = vcmask 1022976
        %v538 = vsel %vm537, %v531, %v536
        %v539 = vsel %vm537, %v533, %v535
        %542 = vst [vmem:[#allocation3 + $0x90] sm:$0xff] %v538
        %543 = vst [vmem:[#allocation3 + $0x98] sm:$0xf] %v539
        %v544 = vld [vmem:[#allocation2] sm:$0xff]
        %v545 = vld [vmem:[#allocation2 + $0x8] sm:$0xff]
        %548 = vrot.lane.b32.xlu0 %v544, 124
        %v549 = vpop.permute.xlu0 %548
        %550 = vrot.lane.b32.xlu0 %v545, 124
        %v551 = vpop.permute.xlu0 %550
        %v552 = vrot.slane %v549, 4
        %v553 = vrot.slane %v551, 4
        %v554 = vsel %vm333, %v552, %v553
        %vm555 = vcmask 1014784
        %v556 = vsel %vm555, %v549, %v554
        %v557 = vsel %vm555, %v551, %v553
        %560 = vst [vmem:[#allocation3 + $0x9c] sm:$0xff] %v556
        %561 = vst [vmem:[#allocation3 + $0xa4] sm:$0xf] %v557
        %v562 = vld [vmem:[#allocation2] sm:$0xff]
        %v563 = vld [vmem:[#allocation2 + $0x8] sm:$0xff]
        %566 = vrot.lane.b32.xlu0 %v562, 108
        %v567 = vpop.permute.xlu0 %566
        %568 = vrot.lane.b32.xlu0 %v563, 108
        %v569 = vpop.permute.xlu0 %568
        %v570 = vrot.slane %v567, 4
        %v571 = vrot.slane %v569, 4
        %v572 = vsel %vm333, %v570, %v571
        %vm573 = vcmask 883712
        %v574 = vsel %vm573, %v567, %v572
        %v575 = vsel %vm573, %v569, %v571
        %578 = vst [vmem:[#allocation3 + $0xa8] sm:$0xff] %v574
        %579 = vst [vmem:[#allocation3 + $0xb0] sm:$0xf] %v575
        %v580 = vld [vmem:[#allocation2] sm:$0xff]
        %v581 = vld [vmem:[#allocation2 + $0x8] sm:$0xff]
        %584 = vrot.lane.b32.xlu0 %v580, 104
        %v585 = vpop.permute.xlu0 %584
        %586 = vrot.lane.b32.xlu0 %v581, 104
        %v587 = vpop.permute.xlu0 %586
        %v588 = vrot.slane %v585, 4
        %v589 = vrot.slane %v587, 4
        %v590 = vsel %vm333, %v588, %v589
        %vm591 = vcmask 850944
        %v592 = vsel %vm591, %v585, %v590
        %v593 = vsel %vm591, %v587, %v589
        %596 = vst [vmem:[#allocation3 + $0xb4] sm:$0xff] %v592
        %597 = vst [vmem:[#allocation3 + $0xbc] sm:$0xf] %v593
        %v598 = vld [vmem:[#allocation2] sm:$0xff]
        %v599 = vld [vmem:[#allocation2 + $0x8] sm:$0xff]
        %602 = vrot.lane.b32.xlu0 %v598, 88
        %v603 = vpop.permute.xlu0 %602
        %604 = vrot.lane.b32.xlu0 %v599, 88
        %v605 = vpop.permute.xlu0 %604
        %v606 = vrot.slane %v603, 4
        %v607 = vrot.slane %v605, 4
        %v608 = vsel %vm333, %v606, %v607
        %vm609 = vcmask 719872
        %v610 = vsel %vm609, %v603, %v608
        %v611 = vsel %vm609, %v605, %v607
        %614 = vst [vmem:[#allocation3 + $0xc0] sm:$0xff] %v610
        %615 = vst [vmem:[#allocation3 + $0xc8] sm:$0xf] %v611
        %v616 = vld [vmem:[#allocation2] sm:$0xff]
        %v617 = vld [vmem:[#allocation2 + $0x8] sm:$0xff]
        %620 = vrot.lane.b32.xlu0 %v616, 84
        %v621 = vpop.permute.xlu0 %620
        %622 = vrot.lane.b32.xlu0 %v617, 84
        %v623 = vpop.permute.xlu0 %622
        %v624 = vrot.slane %v621, 4
        %v625 = vrot.slane %v623, 4
        %v626 = vsel %vm333, %v624, %v625
        %vm627 = vcmask 687104
        %v628 = vsel %vm627, %v621, %v626
        %v629 = vsel %vm627, %v623, %v625
        %632 = vst [vmem:[#allocation3 + $0xcc] sm:$0xff] %v628
        %633 = vst [vmem:[#allocation3 + $0xd4] sm:$0xf] %v629
        %v634 = vld [vmem:[#allocation2] sm:$0xff]
        %v635 = vld [vmem:[#allocation2 + $0x8] sm:$0xff]
        %638 = vrot.lane.b32.xlu0 %v634, 68
        %v639 = vpop.permute.xlu0 %638
        %640 = vrot.lane.b32.xlu0 %v635, 68
        %v641 = vpop.permute.xlu0 %640
        %v642 = vrot.slane %v639, 4
        %v643 = vrot.slane %v641, 4
        %v644 = vsel %vm333, %v642, %v643
        %vm645 = vcmask 556032
        %v646 = vsel %vm645, %v639, %v644
        %v647 = vsel %vm645, %v641, %v643
        %650 = vst [vmem:[#allocation3 + $0xd8] sm:$0xff] %v646
        %651 = vst [vmem:[#allocation3 + $0xe0] sm:$0xf] %v647
        %v652 = vld [vmem:[#allocation2] sm:$0xff]
        %v653 = vld [vmem:[#allocation2 + $0x8] sm:$0xff]
        %656 = vrot.lane.b32.xlu0 %v652, 64
        %v657 = vpop.permute.xlu0 %656
        %658 = vrot.lane.b32.xlu0 %v653, 64
        %v659 = vpop.permute.xlu0 %658
        %v660 = vrot.slane %v657, 4
        %v661 = vrot.slane %v659, 4
        %v662 = vsel %vm333, %v660, %v661
        %vm663 = vcmask 523264
        %v664 = vsel %vm663, %v657, %v662
        %v665 = vsel %vm663, %v659, %v661
        %668 = vst [vmem:[#allocation3 + $0xe4] sm:$0xff] %v664
        %669 = vst [vmem:[#allocation3 + $0xec] sm:$0xf] %v665
        %v670 = vld [vmem:[#allocation2] sm:$0xff]
        %v671 = vld [vmem:[#allocation2 + $0x8] sm:$0xff]
        %674 = vrot.lane.b32.xlu0 %v670, 48
        %v675 = vpop.permute.xlu0 %674
        %676 = vrot.lane.b32.xlu0 %v671, 48
        %v677 = vpop.permute.xlu0 %676
        %v678 = vrot.slane %v675, 4
        %v679 = vrot.slane %v677, 4
        %v680 = vsel %vm333, %v678, %v679
        %vm681 = vcmask 392192
        %v682 = vsel %vm681, %v675, %v680
        %v683 = vsel %vm681, %v677, %v679
        %686 = vst [vmem:[#allocation3 + $0xf0] sm:$0xff] %v682
        %687 = vst [vmem:[#allocation3 + $0xf8] sm:$0xf] %v683
        %v688 = vld [vmem:[#allocation2] sm:$0xff]
        %v689 = vld [vmem:[#allocation2 + $0x8] sm:$0xff]
        %692 = vrot.lane.b32.xlu0 %v688, 47
        %v693 = vpop.permute.xlu0 %692
        %694 = vrot.lane.b32.xlu0 %v689, 47
        %v695 = vpop.permute.xlu0 %694
        %v696 = vrot.slane %v693, 4
        %v697 = vrot.slane %v695, 4
        %v698 = vsel %vm333, %v696, %v697
        %vm699 = vcmask 384000
        %v700 = vsel %vm699, %v693, %v698
        %v701 = vsel %vm699, %v695, %v697
        %704 = vst [vmem:[#allocation3 + $0xfc] sm:$0xff] %v700
        %705 = vst [vmem:[#allocation3 + $0x104] sm:$0xf] %v701
        %v706 = vld [vmem:[#allocation2] sm:$0xff]
        %v707 = vld [vmem:[#allocation2 + $0x8] sm:$0xff]
        %710 = vrot.lane.b32.xlu0 %v706, 46
        %v711 = vpop.permute.xlu0 %710
        %712 = vrot.lane.b32.xlu0 %v707, 46
        %v713 = vpop.permute.xlu0 %712
        %v714 = vrot.slane %v711, 4
        %v715 = vrot.slane %v713, 4
        %v716 = vsel %vm333, %v714, %v715
        %vm717 = vcmask 375808
        %v718 = vsel %vm717, %v711, %v716
        %v719 = vsel %vm717, %v713, %v715
        %722 = vst [vmem:[#allocation3 + $0x108] sm:$0xff] %v718
        %723 = vst [vmem:[#allocation3 + $0x110] sm:$0xf] %v719
        %v724 = vld [vmem:[#allocation2] sm:$0xff]
        %v725 = vld [vmem:[#allocation2 + $0x8] sm:$0xff]
        %728 = vrot.lane.b32.xlu0 %v724, 45
        %v729 = vpop.permute.xlu0 %728
        %730 = vrot.lane.b32.xlu0 %v725, 45
        %v731 = vpop.permute.xlu0 %730
        %v732 = vrot.slane %v729, 4
        %v733 = vrot.slane %v731, 4
        %v734 = vsel %vm333, %v732, %v733
        %vm735 = vcmask 367616
        %v736 = vsel %vm735, %v729, %v734
        %v737 = vsel %vm735, %v731, %v733
        %740 = vst [vmem:[#allocation3 + $0x114] sm:$0xff] %v736
        %741 = vst [vmem:[#allocation3 + $0x11c] sm:$0xf] %v737
        %v742 = vld [vmem:[#allocation2] sm:$0xff]
        %v743 = vld [vmem:[#allocation2 + $0x8] sm:$0xff]
        %746 = vrot.lane.b32.xlu0 %v742, 44
        %v747 = vpop.permute.xlu0 %746
        %748 = vrot.lane.b32.xlu0 %v743, 44
        %v749 = vpop.permute.xlu0 %748
        %v750 = vrot.slane %v747, 4
        %v751 = vrot.slane %v749, 4
        %v752 = vsel %vm333, %v750, %v751
        %vm753 = vcmask 359424
        %v754 = vsel %vm753, %v747, %v752
        %v755 = vsel %vm753, %v749, %v751
        %758 = vst [vmem:[#allocation3 + $0x120] sm:$0xff] %v754
        %759 = vst [vmem:[#allocation3 + $0x128] sm:$0xf] %v755
        %v760 = vld [vmem:[%s2] sm:$0xf]
        %v761 = vld [vmem:[#allocation3] sm:$0xff]
        %v762 = vld [vmem:[#allocation3 + $0x8] sm:$0xf]
        %v763 = vld [vmem:[%s5] sm:$0xff]
        %765 = vset.pattern.permute.xlu0 0
        %766 = vperm.xlu0 %765, %v763
        %v767 = vpop.permute.xlu0 %766
        %v771 = vunpack.c.l.b16 %v761
        %v772 = vunpack.c.h.b16 %v761
        %v773 = vunpack.c.l.b16 %v762
        %v774 = vpack.c.b16 %v771, %v771
        %v775 = vpack.c.b16 %v772, %v772
        %v776 = vpack.c.b16 %v773, %v773
        %vm777 = vcmask 64512
        %v779 = vsel %vm777, %v760, 0
        %vm781 = vcmask 1043456
        %v783 = vsel %vm781, %v774, 0
        %v786 = vsel %vm781, %v775, 0
        %v789 = vsel %vm781, %v776, 0
        %791 = vmatprep.subr.bf16.mxu0 0
        %792 = vmatpush1.bf16.msra.mxu0 0
        %793 = vmatprep.subr.bf16.mxu0 0
        %794 = vmatpush1.bf16.msra.mxu0 0
        %795 = vmatprep.subr.bf16.mxu0 0
        %796 = vmatpush1.bf16.msra.mxu0 0
        %797 = vmatprep.subr.bf16.mxu0 0
        %798 = vmatpush1.bf16.msra.mxu0 0
        %799 = vmatprep.subr.bf16.mxu0 0
        %800 = vmatpush1.bf16.msra.mxu0 0
        %801 = vmatprep.subr.bf16.mxu0 0
        %802 = vmatpush1.bf16.msra.mxu0 0
        %803 = vmatprep.subr.bf16.mxu0 0
        %804 = vmatpush1.bf16.msra.mxu0 0
        %805 = vmatprep.subr.bf16.mxu0 %v786
        %806 = vmatpush1.bf16.msra.mxu0 %v783
        %807 = vmatprep.subr.bf16.mxu0 0
        %808 = vmatpush2.bf16.msra.mxu0 0
        %809 = vmatprep.subr.bf16.mxu0 0
        %810 = vmatpush2.bf16.msra.mxu0 0
        %811 = vmatprep.subr.bf16.mxu0 0
        %812 = vmatpush2.bf16.msra.mxu0 0
        %813 = vmatprep.subr.bf16.mxu0 0
        %814 = vmatpush2.bf16.msra.mxu0 0
        %815 = vmatprep.subr.bf16.mxu0 0
        %816 = vmatpush2.bf16.msra.mxu0 0
        %817 = vmatprep.subr.bf16.mxu0 0
        %818 = vmatpush2.bf16.msra.mxu0 0
        %819 = vmatprep.subr.bf16.mxu0 0
        %820 = vmatpush2.bf16.msra.mxu0 0
        %821 = vmatprep.subr.bf16.mxu0 0
        %822 = vmatpush2.bf16.msra.mxu0 0
        %823 = vmatprep.mubr.bf16.mxu0 0
        %824 = vmatmul.mubr.bf16.gmra.mxu0 %v779
        %v825 = vpop.f32.mrf.mxu0
        %v826 = vadd.f32 %v767, %v825
        %v827 = vpop.f32.mrf.mxu0
        %v828 = vadd.f32 %v767, %v827
        %v829 = vpop.f32.mrf.mxu0
        %v830 = vpop.f32.mrf.mxu0
        %831 = vdwg.mxu0
        %832 = vmatprep.subr.bf16.mxu0 0
        %833 = vmatpush1.bf16.msra.mxu0 0
        %834 = vmatprep.subr.bf16.mxu0 0
        %835 = vmatpush1.bf16.msra.mxu0 0
        %836 = vmatprep.subr.bf16.mxu0 0
        %837 = vmatpush1.bf16.msra.mxu0 0
        %838 = vmatprep.subr.bf16.mxu0 0
        %839 = vmatpush1.bf16.msra.mxu0 0
        %840 = vmatprep.subr.bf16.mxu0 0
        %841 = vmatpush1.bf16.msra.mxu0 0
        %842 = vmatprep.subr.bf16.mxu0 0
        %843 = vmatpush1.bf16.msra.mxu0 0
        %844 = vmatprep.subr.bf16.mxu0 0
        %845 = vmatpush1.bf16.msra.mxu0 0
        %846 = vmatprep.subr.bf16.mxu0 0
        %847 = vmatpush1.bf16.msra.mxu0 %v789
        %848 = vmatprep.subr.bf16.mxu0 0
        %849 = vmatpush2.bf16.msra.mxu0 0
        %850 = vmatprep.subr.bf16.mxu0 0
        %851 = vmatpush2.bf16.msra.mxu0 0
        %852 = vmatprep.subr.bf16.mxu0 0
        %853 = vmatpush2.bf16.msra.mxu0 0
        %854 = vmatprep.subr.bf16.mxu0 0
        %855 = vmatpush2.bf16.msra.mxu0 0
        %856 = vmatprep.subr.bf16.mxu0 0
        %857 = vmatpush2.bf16.msra.mxu0 0
        %858 = vmatprep.subr.bf16.mxu0 0
        %859 = vmatpush2.bf16.msra.mxu0 0
        %860 = vmatprep.subr.bf16.mxu0 0
        %861 = vmatpush2.bf16.msra.mxu0 0
        %862 = vmatprep.subr.bf16.mxu0 0
        %863 = vmatpush2.bf16.msra.mxu0 0
        %864 = vmatprep.mubr.bf16.mxu0 0
        %865 = vmatmul.mubr.bf16.gmra.mxu0 %v779
        %v866 = vpop.f32.mrf.mxu0
        %v867 = vadd.f32 %v767, %v866
        %v868 = vpop.f32.mrf.mxu0
        %v869 = vpop.f32.mrf.mxu0
        %v870 = vpop.f32.mrf.mxu0
        %871 = vdwg.mxu0
        %872 = vst [vmem:[%s306] sm:$0xff] %v826
        %873 = vst [vmem:[%s306 + $0x8] sm:$0xff] %v828
        %874 = vst [vmem:[%s306 + $0x10] sm:$0xff] %v867
        %v875 = vld [vmem:[%s3] sm:$0xf]
        %v876 = vld [vmem:[#allocation3] sm:$0xff]
        %v877 = vld [vmem:[#allocation3 + $0x8] sm:$0xf]
        %v878 = vld [vmem:[#allocation3 + $0xc] sm:$0xff]
        %v879 = vld [vmem:[#allocation3 + $0x14] sm:$0xf]
        %v880 = vld [vmem:[#allocation3 + $0x18] sm:$0xff]
        %v881 = vld [vmem:[#allocation3 + $0x20] sm:$0xf]
        %v882 = vld [vmem:[#allocation3 + $0x24] sm:$0xff]
        %v883 = vld [vmem:[#allocation3 + $0x2c] sm:$0xf]
        %v884 = vld [vmem:[#allocation3 + $0x30] sm:$0xff]
        %v885 = vld [vmem:[#allocation3 + $0x38] sm:$0xf]
        %v886 = vld [vmem:[#allocation3 + $0x3c] sm:$0xff]
        %v887 = vld [vmem:[#allocation3 + $0x44] sm:$0xf]
        %v888 = vld [vmem:[#allocation3 + $0x48] sm:$0xff]
        %v889 = vld [vmem:[#allocation3 + $0x50] sm:$0xf]
        %v890 = vld [vmem:[#allocation3 + $0x54] sm:$0xff]
        %v891 = vld [vmem:[#allocation3 + $0x5c] sm:$0xf]
        %v892 = vld [vmem:[#allocation3 + $0x60] sm:$0xff]
        %v893 = vld [vmem:[#allocation3 + $0x68] sm:$0xf]
        %v894 = vld [vmem:[%s5 + $0x8] sm:$0xff]
        %896 = vset.pattern.permute.xlu0 0
        %897 = vperm.xlu0 %896, %v894
        %v898 = vpop.permute.xlu0 %897
        %v918 = vunpack.c.l.b16 %v876
        %v919 = vunpack.c.h.b16 %v876
        %v920 = vunpack.c.l.b16 %v877
        %v921 = vunpack.c.l.b16 %v878
        %v922 = vunpack.c.h.b16 %v878
        %v923 = vunpack.c.l.b16 %v879
        %v924 = vunpack.c.l.b16 %v880
        %v925 = vunpack.c.h.b16 %v880
        %v926 = vunpack.c.l.b16 %v881
        %v927 = vunpack.c.l.b16 %v882
        %v928 = vunpack.c.h.b16 %v882
        %v929 = vunpack.c.l.b16 %v883
        %v930 = vunpack.c.l.b16 %v884
        %v931 = vunpack.c.h.b16 %v884
        %v932 = vunpack.c.l.b16 %v885
        %v933 = vunpack.c.l.b16 %v886
        %v934 = vunpack.c.h.b16 %v886
        %v935 = vunpack.c.l.b16 %v887
        %v936 = vunpack.c.l.b16 %v888
        %v937 = vunpack.c.h.b16 %v888
        %v938 = vunpack.c.l.b16 %v889
        %v939 = vunpack.c.l.b16 %v890
        %v940 = vunpack.c.h.b16 %v890
        %v941 = vunpack.c.l.b16 %v891
        %v942 = vunpack.c.l.b16 %v892
        %v943 = vunpack.c.h.b16 %v892
        %v944 = vunpack.c.l.b16 %v893
        %v945 = vpack.c.b16 %v921, %v918
        %v946 = vpack.c.b16 %v922, %v919
        %v947 = vpack.c.b16 %v923, %v920
        %v948 = vpack.c.b16 %v927, %v924
        %v949 = vpack.c.b16 %v928, %v925
        %v950 = vpack.c.b16 %v929, %v926
        %v951 = vpack.c.b16 %v933, %v930
        %v952 = vpack.c.b16 %v934, %v931
        %v953 = vpack.c.b16 %v935, %v932
        %v954 = vpack.c.b16 %v939, %v936
        %v955 = vpack.c.b16 %v940, %v937
        %v956 = vpack.c.b16 %v941, %v938
        %v957 = vpack.c.b16 %v942, %v942
        %v958 = vpack.c.b16 %v943, %v943
        %v959 = vpack.c.b16 %v944, %v944
        %vm972 = vcmask 588800
        %v974 = vsel %vm972, %v875, 0
        %v977 = vsel %vm781, %v957, 0
        %v980 = vsel %vm781, %v958, 0
        %v983 = vsel %vm781, %v959, 0
        %985 = vmatprep.subr.bf16.mxu0 0
        %986 = vmatpush1.bf16.msra.mxu0 0
        %987 = vmatprep.subr.bf16.mxu0 0
        %988 = vmatpush1.bf16.msra.mxu0 0
        %989 = vmatprep.subr.bf16.mxu0 0
        %990 = vmatpush1.bf16.msra.mxu0 0
        %991 = vmatprep.subr.bf16.mxu0 %v980
        %992 = vmatpush1.bf16.msra.mxu0 %v977
        %993 = vmatprep.subr.bf16.mxu0 %v955
        %994 = vmatpush1.bf16.msra.mxu0 %v954
        %995 = vmatprep.subr.bf16.mxu0 %v952
        %996 = vmatpush1.bf16.msra.mxu0 %v951
        %997 = vmatprep.subr.bf16.mxu0 %v949
        %998 = vmatpush1.bf16.msra.mxu0 %v948
        %999 = vmatprep.subr.bf16.mxu0 %v946
        %1000 = vmatpush1.bf16.msra.mxu0 %v945
        %1001 = vmatprep.subr.bf16.mxu0 0
        %1002 = vmatpush2.bf16.msra.mxu0 0
        %1003 = vmatprep.subr.bf16.mxu0 0
        %1004 = vmatpush2.bf16.msra.mxu0 0
        %1005 = vmatprep.subr.bf16.mxu0 0
        %1006 = vmatpush2.bf16.msra.mxu0 0
        %1007 = vmatprep.subr.bf16.mxu0 0
        %1008 = vmatpush2.bf16.msra.mxu0 0
        %1009 = vmatprep.subr.bf16.mxu0 0
        %1010 = vmatpush2.bf16.msra.mxu0 0
        %1011 = vmatprep.subr.bf16.mxu0 0
        %1012 = vmatpush2.bf16.msra.mxu0 0
        %1013 = vmatprep.subr.bf16.mxu0 0
        %1014 = vmatpush2.bf16.msra.mxu0 0
        %1015 = vmatprep.subr.bf16.mxu0 0
        %1016 = vmatpush2.bf16.msra.mxu0 0
        %1017 = vmatprep.mubr.bf16.mxu0 0
        %1018 = vmatmul.mubr.bf16.gmra.mxu0 %v974
        %v1019 = vpop.f32.mrf.mxu0
        %v1020 = vadd.f32 %v898, %v1019
        %v1021 = vpop.f32.mrf.mxu0
        %v1022 = vadd.f32 %v898, %v1021
        %v1023 = vpop.f32.mrf.mxu0
        %v1024 = vpop.f32.mrf.mxu0
        %1025 = vdwg.mxu0
        %1026 = vmatprep.subr.bf16.mxu0 0
        %1027 = vmatpush1.bf16.msra.mxu0 0
        %1028 = vmatprep.subr.bf16.mxu0 0
        %1029 = vmatpush1.bf16.msra.mxu0 0
        %1030 = vmatprep.subr.bf16.mxu0 0
        %1031 = vmatpush1.bf16.msra.mxu0 0
        %1032 = vmatprep.subr.bf16.mxu0 0
        %1033 = vmatpush1.bf16.msra.mxu0 %v983
        %1034 = vmatprep.subr.bf16.mxu0 0
        %1035 = vmatpush1.bf16.msra.mxu0 %v956
        %1036 = vmatprep.subr.bf16.mxu0 0
        %1037 = vmatpush1.bf16.msra.mxu0 %v953
        %1038 = vmatprep.subr.bf16.mxu0 0
        %1039 = vmatpush1.bf16.msra.mxu0 %v950
        %1040 = vmatprep.subr.bf16.mxu0 0
        %1041 = vmatpush1.bf16.msra.mxu0 %v947
        %1042 = vmatprep.subr.bf16.mxu0 0
        %1043 = vmatpush2.bf16.msra.mxu0 0
        %1044 = vmatprep.subr.bf16.mxu0 0
        %1045 = vmatpush2.bf16.msra.mxu0 0
        %1046 = vmatprep.subr.bf16.mxu0 0
        %1047 = vmatpush2.bf16.msra.mxu0 0
        %1048 = vmatprep.subr.bf16.mxu0 0
        %1049 = vmatpush2.bf16.msra.mxu0 0
        %1050 = vmatprep.subr.bf16.mxu0 0
        %1051 = vmatpush2.bf16.msra.mxu0 0
        %1052 = vmatprep.subr.bf16.mxu0 0
        %1053 = vmatpush2.bf16.msra.mxu0 0
        %1054 = vmatprep.subr.bf16.mxu0 0
        %1055 = vmatpush2.bf16.msra.mxu0 0
        %1056 = vmatprep.subr.bf16.mxu0 0
        %1057 = vmatpush2.bf16.msra.mxu0 0
        %1058 = vmatprep.mubr.bf16.mxu0 0
        %1059 = vmatmul.mubr.bf16.gmra.mxu0 %v974
        %v1060 = vpop.f32.mrf.mxu0
        %v1061 = vadd.f32 %v898, %v1060
        %v1062 = vpop.f32.mrf.mxu0
        %v1063 = vpop.f32.mrf.mxu0
        %v1064 = vpop.f32.mrf.mxu0
        %1065 = vdwg.mxu0
        %1066 = vst [vmem:[%s306 + $0x18] sm:$0xff] %v1020
        %1067 = vst [vmem:[%s306 + $0x20] sm:$0xff] %v1022
        %1068 = vst [vmem:[%s306 + $0x28] sm:$0xff] %v1061
        %v1069 = vld [vmem:[%s4] sm:$0xff]
        %v1070 = vld [vmem:[#allocation3] sm:$0xff]
        %v1071 = vld [vmem:[#allocation3 + $0x8] sm:$0xf]
        %v1072 = vld [vmem:[#allocation3 + $0xc] sm:$0xff]
        %v1073 = vld [vmem:[#allocation3 + $0x14] sm:$0xf]
        %v1074 = vld [vmem:[#allocation3 + $0x18] sm:$0xff]
        %v1075 = vld [vmem:[#allocation3 + $0x20] sm:$0xf]
        %v1076 = vld [vmem:[#allocation3 + $0x24] sm:$0xff]
        %v1077 = vld [vmem:[#allocation3 + $0x2c] sm:$0xf]
        %v1078 = vld [vmem:[#allocation3 + $0x30] sm:$0xff]
        %v1079 = vld [vmem:[#allocation3 + $0x38] sm:$0xf]
        %v1080 = vld [vmem:[#allocation3 + $0x3c] sm:$0xff]
        %v1081 = vld [vmem:[#allocation3 + $0x44] sm:$0xf]
        %v1082 = vld [vmem:[#allocation3 + $0x48] sm:$0xff]
        %v1083 = vld [vmem:[#allocation3 + $0x50] sm:$0xf]
        %v1084 = vld [vmem:[#allocation3 + $0x54] sm:$0xff]
        %v1085 = vld [vmem:[#allocation3 + $0x5c] sm:$0xf]
        %v1086 = vld [vmem:[#allocation3 + $0x60] sm:$0xff]
        %v1087 = vld [vmem:[#allocation3 + $0x68] sm:$0xf]
        %v1088 = vld [vmem:[#allocation3 + $0x6c] sm:$0xff]
        %v1089 = vld [vmem:[#allocation3 + $0x74] sm:$0xf]
        %v1090 = vld [vmem:[#allocation3 + $0x78] sm:$0xff]
        %v1091 = vld [vmem:[#allocation3 + $0x80] sm:$0xf]
        %v1092 = vld [vmem:[#allocation3 + $0x84] sm:$0xff]
        %v1093 = vld [vmem:[#allocation3 + $0x8c] sm:$0xf]
        %v1094 = vld [vmem:[#allocation3 + $0x90] sm:$0xff]
        %v1095 = vld [vmem:[#allocation3 + $0x98] sm:$0xf]
        %v1096 = vld [vmem:[#allocation3 + $0x9c] sm:$0xff]
        %v1097 = vld [vmem:[#allocation3 + $0xa4] sm:$0xf]
        %v1098 = vld [vmem:[#allocation3 + $0xa8] sm:$0xff]
        %v1099 = vld [vmem:[#allocation3 + $0xb0] sm:$0xf]
        %v1100 = vld [vmem:[#allocation3 + $0xb4] sm:$0xff]
        %v1101 = vld [vmem:[#allocation3 + $0xbc] sm:$0xf]
        %v1102 = vld [vmem:[#allocation3 + $0xc0] sm:$0xff]
        %v1103 = vld [vmem:[#allocation3 + $0xc8] sm:$0xf]
        %v1104 = vld [vmem:[#allocation3 + $0xcc] sm:$0xff]
        %v1105 = vld [vmem:[#allocation3 + $0xd4] sm:$0xf]
        %v1106 = vld [vmem:[#allocation3 + $0xd8] sm:$0xff]
        %v1107 = vld [vmem:[#allocation3 + $0xe0] sm:$0xf]
        %v1108 = vld [vmem:[#allocation3 + $0xe4] sm:$0xff]
        %v1109 = vld [vmem:[#allocation3 + $0xec] sm:$0xf]
        %v1110 = vld [vmem:[#allocation3 + $0xf0] sm:$0xff]
        %v1111 = vld [vmem:[#allocation3 + $0xf8] sm:$0xf]
        %v1112 = vld [vmem:[#allocation3 + $0xfc] sm:$0xff]
        %v1113 = vld [vmem:[#allocation3 + $0x104] sm:$0xf]
        %v1114 = vld [vmem:[#allocation3 + $0x108] sm:$0xff]
        %v1115 = vld [vmem:[#allocation3 + $0x110] sm:$0xf]
        %v1116 = vld [vmem:[#allocation3 + $0x114] sm:$0xff]
        %v1117 = vld [vmem:[#allocation3 + $0x11c] sm:$0xf]
        %v1118 = vld [vmem:[#allocation3 + $0x120] sm:$0xff]
        %v1119 = vld [vmem:[#allocation3 + $0x128] sm:$0xf]
        %v1120 = vld [vmem:[%s5 + $0x10] sm:$0xff]
        %1122 = vset.pattern.permute.xlu0 0
        %1123 = vperm.xlu0 %1122, %v1120
        %v1124 = vpop.permute.xlu0 %1123
        %v1127 = vunpack.c.l.b16 %v1069
        %v1128 = vunpack.c.h.b16 %v1069
        %v1129 = vpack.c.b16 %v1127, %v1127
        %v1130 = vpack.c.b16 %v1128, %v1128
        %v1182 = vunpack.c.l.b16 %v1070
        %v1183 = vunpack.c.h.b16 %v1070
        %v1184 = vunpack.c.l.b16 %v1071
        %v1185 = vunpack.c.l.b16 %v1072
        %v1186 = vunpack.c.h.b16 %v1072
        %v1187 = vunpack.c.l.b16 %v1073
        %v1188 = vunpack.c.l.b16 %v1074
        %v1189 = vunpack.c.h.b16 %v1074
        %v1190 = vunpack.c.l.b16 %v1075
        %v1191 = vunpack.c.l.b16 %v1076
        %v1192 = vunpack.c.h.b16 %v1076
        %v1193 = vunpack.c.l.b16 %v1077
        %v1194 = vunpack.c.l.b16 %v1078
        %v1195 = vunpack.c.h.b16 %v1078
        %v1196 = vunpack.c.l.b16 %v1079
        %v1197 = vunpack.c.l.b16 %v1080
        %v1198 = vunpack.c.h.b16 %v1080
        %v1199 = vunpack.c.l.b16 %v1081
        %v1200 = vunpack.c.l.b16 %v1082
        %v1201 = vunpack.c.h.b16 %v1082
        %v1202 = vunpack.c.l.b16 %v1083
        %v1203 = vunpack.c.l.b16 %v1084
        %v1204 = vunpack.c.h.b16 %v1084
        %v1205 = vunpack.c.l.b16 %v1085
        %v1206 = vunpack.c.l.b16 %v1086
        %v1207 = vunpack.c.h.b16 %v1086
        %v1208 = vunpack.c.l.b16 %v1087
        %v1209 = vunpack.c.l.b16 %v1088
        %v1210 = vunpack.c.h.b16 %v1088
        %v1211 = vunpack.c.l.b16 %v1089
        %v1212 = vunpack.c.l.b16 %v1090
        %v1213 = vunpack.c.h.b16 %v1090
        %v1214 = vunpack.c.l.b16 %v1091
        %v1215 = vunpack.c.l.b16 %v1092
        %v1216 = vunpack.c.h.b16 %v1092
        %v1217 = vunpack.c.l.b16 %v1093
        %v1218 = vunpack.c.l.b16 %v1094
        %v1219 = vunpack.c.h.b16 %v1094
        %v1220 = vunpack.c.l.b16 %v1095
        %v1221 = vunpack.c.l.b16 %v1096
        %v1222 = vunpack.c.h.b16 %v1096
        %v1223 = vunpack.c.l.b16 %v1097
        %v1224 = vunpack.c.l.b16 %v1098
        %v1225 = vunpack.c.h.b16 %v1098
        %v1226 = vunpack.c.l.b16 %v1099
        %v1227 = vunpack.c.l.b16 %v1100
        %v1228 = vunpack.c.h.b16 %v1100
        %v1229 = vunpack.c.l.b16 %v1101
        %v1230 = vunpack.c.l.b16 %v1102
        %v1231 = vunpack.c.h.b16 %v1102
        %v1232 = vunpack.c.l.b16 %v1103
        %v1233 = vunpack.c.l.b16 %v1104
        %v1234 = vunpack.c.h.b16 %v1104
        %v1235 = vunpack.c.l.b16 %v1105
        %v1236 = vunpack.c.l.b16 %v1106
        %v1237 = vunpack.c.h.b16 %v1106
        %v1238 = vunpack.c.l.b16 %v1107
        %v1239 = vunpack.c.l.b16 %v1108
        %v1240 = vunpack.c.h.b16 %v1108
        %v1241 = vunpack.c.l.b16 %v1109
        %v1242 = vunpack.c.l.b16 %v1110
        %v1243 = vunpack.c.h.b16 %v1110
        %v1244 = vunpack.c.l.b16 %v1111
        %v1245 = vunpack.c.l.b16 %v1112
        %v1246 = vunpack.c.h.b16 %v1112
        %v1247 = vunpack.c.l.b16 %v1113
        %v1248 = vunpack.c.l.b16 %v1114
        %v1249 = vunpack.c.h.b16 %v1114
        %v1250 = vunpack.c.l.b16 %v1115
        %v1251 = vunpack.c.l.b16 %v1116
        %v1252 = vunpack.c.h.b16 %v1116
        %v1253 = vunpack.c.l.b16 %v1117
        %v1254 = vunpack.c.l.b16 %v1118
        %v1255 = vunpack.c.h.b16 %v1118
        %v1256 = vunpack.c.l.b16 %v1119
        %v1257 = vpack.c.b16 %v1185, %v1182
        %v1258 = vpack.c.b16 %v1186, %v1183
        %v1259 = vpack.c.b16 %v1187, %v1184
        %v1260 = vpack.c.b16 %v1191, %v1188
        %v1261 = vpack.c.b16 %v1192, %v1189
        %v1262 = vpack.c.b16 %v1193, %v1190
        %v1263 = vpack.c.b16 %v1197, %v1194
        %v1264 = vpack.c.b16 %v1198, %v1195
        %v1265 = vpack.c.b16 %v1199, %v1196
        %v1266 = vpack.c.b16 %v1203, %v1200
        %v1267 = vpack.c.b16 %v1204, %v1201
        %v1268 = vpack.c.b16 %v1205, %v1202
        %v1269 = vpack.c.b16 %v1209, %v1206
        %v1270 = vpack.c.b16 %v1210, %v1207
        %v1271 = vpack.c.b16 %v1211, %v1208
        %v1272 = vpack.c.b16 %v1215, %v1212
        %v1273 = vpack.c.b16 %v1216, %v1213
        %v1274 = vpack.c.b16 %v1217, %v1214
        %v1275 = vpack.c.b16 %v1221, %v1218
        %v1276 = vpack.c.b16 %v1222, %v1219
        %v1277 = vpack.c.b16 %v1223, %v1220
        %v1278 = vpack.c.b16 %v1227, %v1224
        %v1279 = vpack.c.b16 %v1228, %v1225
        %v1280 = vpack.c.b16 %v1229, %v1226
        %v1281 = vpack.c.b16 %v1233, %v1230
        %v1282 = vpack.c.b16 %v1234, %v1231
        %v1283 = vpack.c.b16 %v1235, %v1232
        %v1284 = vpack.c.b16 %v1239, %v1236
        %v1285 = vpack.c.b16 %v1240, %v1237
        %v1286 = vpack.c.b16 %v1241, %v1238
        %v1287 = vpack.c.b16 %v1245, %v1242
        %v1288 = vpack.c.b16 %v1246, %v1243
        %v1289 = vpack.c.b16 %v1247, %v1244
        %v1290 = vpack.c.b16 %v1251, %v1248
        %v1291 = vpack.c.b16 %v1252, %v1249
        %v1292 = vpack.c.b16 %v1253, %v1250
        %v1293 = vpack.c.b16 %v1254, %v1254
        %v1294 = vpack.c.b16 %v1255, %v1255
        %v1295 = vpack.c.b16 %v1256, %v1256
        %v1333 = vsel %vm972, %v1130, 0
        %v1336 = vsel %vm781, %v1293, 0
        %v1339 = vsel %vm781, %v1294, 0
        %v1342 = vsel %vm781, %v1295, 0
        %1344 = vmatprep.subr.bf16.mxu0 %v1279
        %1345 = vmatpush1.bf16.msra.mxu0 %v1278
        %1346 = vmatprep.subr.bf16.mxu0 %v1276
        %1347 = vmatpush1.bf16.msra.mxu0 %v1275
        %1348 = vmatprep.subr.bf16.mxu0 %v1273
        %1349 = vmatpush1.bf16.msra.mxu0 %v1272
        %1350 = vmatprep.subr.bf16.mxu0 %v1270
        %1351 = vmatpush1.bf16.msra.mxu0 %v1269
        %1352 = vmatprep.subr.bf16.mxu0 %v1267
        %1353 = vmatpush1.bf16.msra.mxu0 %v1266
        %1354 = vmatprep.subr.bf16.mxu0 %v1264
        %1355 = vmatpush1.bf16.msra.mxu0 %v1263
        %1356 = vmatprep.subr.bf16.mxu0 %v1261
        %1357 = vmatpush1.bf16.msra.mxu0 %v1260
        %1358 = vmatprep.subr.bf16.mxu0 %v1258
        %1359 = vmatpush1.bf16.msra.mxu0 %v1257
        %1360 = vmatprep.subr.bf16.mxu0 0
        %1361 = vmatpush2.bf16.msra.mxu0 0
        %1362 = vmatprep.subr.bf16.mxu0 0
        %1363 = vmatpush2.bf16.msra.mxu0 0
        %1364 = vmatprep.subr.bf16.mxu0 0
        %1365 = vmatpush2.bf16.msra.mxu0 0
        %1366 = vmatprep.subr.bf16.mxu0 %v1339
        %1367 = vmatpush2.bf16.msra.mxu0 %v1336
        %1368 = vmatprep.subr.bf16.mxu0 %v1291
        %1369 = vmatpush2.bf16.msra.mxu0 %v1290
        %1370 = vmatprep.subr.bf16.mxu0 %v1288
        %1371 = vmatpush2.bf16.msra.mxu0 %v1287
        %1372 = vmatprep.subr.bf16.mxu0 %v1285
        %1373 = vmatpush2.bf16.msra.mxu0 %v1284
        %1374 = vmatprep.subr.bf16.mxu0 %v1282
        %1375 = vmatpush2.bf16.msra.mxu0 %v1281
        %1376 = vmatprep.mubr.bf16.mxu0 %v1333
        %1377 = vmatmul.mubr.bf16.gmra.mxu0 %v1129
        %v1378 = vpop.f32.mrf.mxu0
        %v1379 = vadd.f32 %v1124, %v1378
        %v1380 = vpop.f32.mrf.mxu0
        %v1381 = vadd.f32 %v1124, %v1380
        %v1382 = vpop.f32.mrf.mxu0
        %v1383 = vpop.f32.mrf.mxu0
        %1384 = vdwg.mxu0
        %1385 = vmatprep.subr.bf16.mxu0 0
        %1386 = vmatpush1.bf16.msra.mxu0 %v1280
        %1387 = vmatprep.subr.bf16.mxu0 0
        %1388 = vmatpush1.bf16.msra.mxu0 %v1277
        %1389 = vmatprep.subr.bf16.mxu0 0
        %1390 = vmatpush1.bf16.msra.mxu0 %v1274
        %1391 = vmatprep.subr.bf16.mxu0 0
        %1392 = vmatpush1.bf16.msra.mxu0 %v1271
        %1393 = vmatprep.subr.bf16.mxu0 0
        %1394 = vmatpush1.bf16.msra.mxu0 %v1268
        %1395 = vmatprep.subr.bf16.mxu0 0
        %1396 = vmatpush1.bf16.msra.mxu0 %v1265
        %1397 = vmatprep.subr.bf16.mxu0 0
        %1398 = vmatpush1.bf16.msra.mxu0 %v1262
        %1399 = vmatprep.subr.bf16.mxu0 0
        %1400 = vmatpush1.bf16.msra.mxu0 %v1259
        %1401 = vmatprep.subr.bf16.mxu0 0
        %1402 = vmatpush2.bf16.msra.mxu0 0
        %1403 = vmatprep.subr.bf16.mxu0 0
        %1404 = vmatpush2.bf16.msra.mxu0 0
        %1405 = vmatprep.subr.bf16.mxu0 0
        %1406 = vmatpush2.bf16.msra.mxu0 0
        %1407 = vmatprep.subr.bf16.mxu0 0
        %1408 = vmatpush2.bf16.msra.mxu0 %v1342
        %1409 = vmatprep.subr.bf16.mxu0 0
        %1410 = vmatpush2.bf16.msra.mxu0 %v1292
        %1411 = vmatprep.subr.bf16.mxu0 0
        %1412 = vmatpush2.bf16.msra.mxu0 %v1289
        %1413 = vmatprep.subr.bf16.mxu0 0
        %1414 = vmatpush2.bf16.msra.mxu0 %v1286
        %1415 = vmatprep.subr.bf16.mxu0 0
        %1416 = vmatpush2.bf16.msra.mxu0 %v1283
        %1417 = vmatprep.mubr.bf16.mxu0 %v1333
        %1418 = vmatmul.mubr.bf16.gmra.mxu0 %v1129
        %v1419 = vpop.f32.mrf.mxu0
        %v1420 = vadd.f32 %v1124, %v1419
        %v1421 = vpop.f32.mrf.mxu0
        %v1422 = vpop.f32.mrf.mxu0
        %v1423 = vpop.f32.mrf.mxu0
        %1424 = vdwg.mxu0
        %1425 = vst [vmem:[%s306 + $0x30] sm:$0xff] %v1379
        %1426 = vst [vmem:[%s306 + $0x38] sm:$0xff] %v1381
        %1427 = vst [vmem:[%s306 + $0x40] sm:$0xff] %v1420
        %s1428 = sand.u32 %s185, 1
        %s1429 = scalar_lea.sflag [#allocation6], %s1428
        %s1430 = sand.u32 %s185, 1
        %s1431 = smul.addr %s1430, 72
        %s1432 = scalar_lea.vmem [#allocation7], %s1431
        // Predicated region
        $region49: #{tpu_custom_call.1} parent=43 // pred_check
          %p1433 = pneg %p195
        $region50: #{tpu_custom_call.1} parent=43 // pred_check_branch
          %1435 = sbr.rel (%p1433) target = $region52
        $region51: #{tpu_custom_call.1} parent=43 // pred_region
          %s1436 = smul.u32 3, %s28
          %s1438 = ssub.s32 1152, 1152
          %1439 = vsyncadd %s1429, %s1438
          %s1440 = smul.addr %s27, 9
          %s1441 = sadd.s32 %s1436, %s1440
          %s1442 = smul.addr %s1441, 128
          %s1443 = scalar_lea.hbm %s6, %s1442
          %s1444 = sshll.u32 %s1432, 4
          %s1445 = int_to_ptr.vmem [resolvable:$true] %s1444
          %1450 = dma.vmem_to_hbm [thread:$0]  %s1445, 1152, %s1443, %s1429, 384, 384, 24
        $region52: #{tpu_custom_call.1} parent=43 // pred_fallthru
          _
      $region44: #{tpu_custom_call.1} parent=5 // pred_fallthru
        _
      %p1451 = scmp.le.s32.totalorder 2, %s18
      // Predicated region
      $region53: #{tpu_custom_call.1} parent=5 // pred_check
        %p1452 = pneg %p1451
      $region54: #{tpu_custom_call.1} parent=5 // pred_check_branch
        %1454 = sbr.rel (%p1452) target = $region56
      $region55: #{tpu_custom_call.1} parent=5 // pred_region
        %s1455 = ssub.s32 %s18, 2
        // Predicated region
        $region57: #{tpu_custom_call.1} parent=55 // pred_check
          %p1456 = pneg %p201
        $region58: #{tpu_custom_call.1} parent=55 // pred_check_branch
          %1458 = sbr.rel (%p1456) target = $region60
        $region59: #{tpu_custom_call.1} parent=55 // pred_region
          %s1459 = sand.u32 %s186, 1
          %s1460 = scalar_lea.sflag [#allocation6], %s1459
          %s1461 = sand.u32 %s186, 1
          %s1462 = smul.addr %s1461, 72
          %s1463 = scalar_lea.vmem [#allocation7], %s1462
          %1464 = dma.done %s1460, 1152
        $region60: #{tpu_custom_call.1} parent=55 // pred_fallthru
          _
      $region56: #{tpu_custom_call.1} parent=5 // pred_fallthru
        _
    $region6: #{tpu_custom_call.1} parent=1 // loop_footer
      %s22 = sadd.s32 1, %s18
    $region7: #{tpu_custom_call.1} parent=1 // loop_footer_branch
      %17 = sbr.rel target = $region3
    $region8: #{tpu_custom_call.1} parent=1 // loop_exit
      _
    %1465 = vsyncpa [#allocation5], 1
    %s1466 = scalar_lea.sflag [#allocation5], 1
    %1467 = vsyncpa %s1466, 1
    %1468 = vsyncpa [#allocation6], 1
    %s1469 = scalar_lea.sflag [#allocation6], 1
    %1470 = vsyncpa %s1469, 1

</llo_original>
